<compile_context>
chip_gen: v7x
topology: tpu7x:2x2x1
jax: 0.10.0
libtpu: 0.0.40
codegen_flags: <defaults>
</compile_context>

<pallas_src>
import functools

import jax
import jax.numpy as jnp
from jax import lax
from jax.experimental import pallas as pl
from jax.experimental.pallas import tpu as pltpu

LANE = 128          # lane-dense padding target for matmul N dims
SUB = 16            # sublane granularity (safe for bf16-packed tiles)
VMEM_LIMIT = 48 * 1024 * 1024


def _round_up(x, m):
    return (x + m - 1) // m * m


# ----------------------------- Pallas kernels ------------------------------

def _matmul_bias_act_kernel(x_ref, w_ref, b_ref, o_ref, *, relu):
    """One (TM, K) x (K, N) tile: bf16 inputs, f32 accumulate, bias (+ReLU)."""
    acc = jnp.dot(x_ref[...], w_ref[...], preferred_element_type=jnp.float32)
    acc = acc + b_ref[...]
    if relu:
        acc = jnp.maximum(acc, 0.0)
    o_ref[...] = acc.astype(o_ref.dtype)


def pallas_matmul_bias(x, w, b, *, relu, out_dtype=jnp.bfloat16, tm=512):
    """y = relu?(x @ w + b); x:(M,K) bf16, w:(K,N) bf16, b:(1,N) f32.

    M is tiled (TM rows / grid step, parallel axis); w and b stay resident in
    VMEM via constant index_maps.  Rows are zero-padded to a multiple of TM and
    sliced off on return.  N is expected to already be lane-dense (mult of 128).
    """
    M, K = x.shape
    Kw, N = w.shape
    assert Kw == K
    TM = min(tm, _round_up(M, SUB))
    M_pad = _round_up(M, TM)
    if M_pad != M:
        x = jnp.pad(x, ((0, M_pad - M), (0, 0)))

    out_bytes = jnp.dtype(out_dtype).itemsize
    cost = pl.CostEstimate(
        flops=2 * M_pad * K * N,
        transcendentals=0,
        bytes_accessed=(M_pad * K * x.dtype.itemsize
                        + K * N * w.dtype.itemsize
                        + N * b.dtype.itemsize
                        + M_pad * N * out_bytes),
    )

    out = pl.pallas_call(
        functools.partial(_matmul_bias_act_kernel, relu=relu),
        out_shape=jax.ShapeDtypeStruct((M_pad, N), out_dtype),
        grid=(M_pad // TM,),
        in_specs=[
            pl.BlockSpec((TM, K), lambda i: (i, 0)),   # activations: tiled rows
            pl.BlockSpec((K, N), lambda i: (0, 0)),    # weight: resident
            pl.BlockSpec((1, N), lambda i: (0, 0)),    # bias: resident
        ],
        out_specs=pl.BlockSpec((TM, N), lambda i: (i, 0)),
        compiler_params=pltpu.CompilerParams(
            dimension_semantics=("parallel",),
            vmem_limit_bytes=VMEM_LIMIT,
        ),
        cost_estimate=cost,
    )(x, w, b)
    return out[:M]


def _dueling_head_kernel(feat_ref, w1_ref, b1_ref, w2_ref, b2_ref, o_ref, *,
                         n_actions):
    """Fused dueling head on lane-dense merged weights.

    w1 = [wa1 | wv1] : (F, 1024);  w2 : (1024, NP) block-diagonal with
    cols [0, A) = advantage weights, col A = value weights, rest zero.
    """
    h = jnp.dot(feat_ref[...], w1_ref[...], preferred_element_type=jnp.float32)
    h = jnp.maximum(h + b1_ref[...], 0.0)
    y = jnp.dot(h.astype(w2_ref.dtype), w2_ref[...],
                preferred_element_type=jnp.float32)
    y = y + b2_ref[...]                       # cols [0,A): adv, col A: val

    lane = lax.broadcasted_iota(jnp.int32, y.shape, dimension=1)
    adv_mask = (lane < n_actions).astype(jnp.float32)
    val_mask = (lane == n_actions).astype(jnp.float32)
    adv_mean = jnp.sum(y * adv_mask, axis=1, keepdims=True) * (1.0 / n_actions)
    val = jnp.sum(y * val_mask, axis=1, keepdims=True)
    # Q = V + (A - mean(A)); junk in padded columns is sliced off by the caller.
    o_ref[...] = y + val - adv_mean


def pallas_dueling_head(feat, w1, b1, w2, b2, n_actions):
    B, F = feat.shape
    H2 = w1.shape[1]
    NP = w2.shape[1]
    TB = min(256, _round_up(B, SUB))
    B_pad = _round_up(B, TB)
    if B_pad != B:
        feat = jnp.pad(feat, ((0, B_pad - B), (0, 0)))

    cost = pl.CostEstimate(
        flops=2 * B_pad * F * H2 + 2 * B_pad * H2 * NP,
        transcendentals=0,
        bytes_accessed=(B_pad * F * feat.dtype.itemsize
                        + F * H2 * w1.dtype.itemsize
                        + H2 * NP * w2.dtype.itemsize
                        + B_pad * NP * 4),
    )

    out = pl.pallas_call(
        functools.partial(_dueling_head_kernel, n_actions=n_actions),
        out_shape=jax.ShapeDtypeStruct((B_pad, NP), jnp.float32),
        grid=(B_pad // TB,),
        in_specs=[
            pl.BlockSpec((TB, F), lambda i: (i, 0)),   # features: tiled rows
            pl.BlockSpec((F, H2), lambda i: (0, 0)),   # merged fc1 weight
            pl.BlockSpec((1, H2), lambda i: (0, 0)),
            pl.BlockSpec((H2, NP), lambda i: (0, 0)),  # merged fc2 weight
            pl.BlockSpec((1, NP), lambda i: (0, 0)),
        ],
        out_specs=pl.BlockSpec((TB, NP), lambda i: (i, 0)),
        compiler_params=pltpu.CompilerParams(
            dimension_semantics=("parallel",),
            vmem_limit_bytes=VMEM_LIMIT,
        ),
        cost_estimate=cost,
    )(feat, w1, b1, w2, b2)
    return out[:B, :n_actions]


# ------------------------------- JAX glue ----------------------------------

def im2col_nhwc(x, kh, kw, stride):
    """Extract conv patches from NHWC input.

    Returns (B*OH*OW, KH*KW*C): channels-last gathering, so each patch feature
    block is contiguous.  Matching flattened weight layout is (KH, KW, Cin) ->
    Cout, i.e. PyTorch weight.permute(2, 3, 1, 0).reshape(KH*KW*Cin, Cout).
    """
    B, H, W, C = x.shape
    OH = (H - kh) // stride + 1
    OW = (W - kw) // stride + 1
    cols = []
    for i in range(kh):
        for j in range(kw):
            cols.append(
                x[:, i:i + stride * OH:stride, j:j + stride * OW:stride, :])
    cols = jnp.stack(cols, axis=3)                       # (B, OH, OW, KH*KW, C)
    cols = cols.reshape(B * OH * OW, kh * kw * C)
    return cols, OH, OW


def conv2d_relu_nhwc(x, w_flat, b, kh, kw, stride, cout):
    """Conv2d (valid padding) + bias + ReLU on NHWC activations.

    w_flat: (KH*KW*Cin, Cout_pad) bf16 with zero-padded extra columns.
    Returns NHWC bf16 activations with padding channels sliced off.
    """
    B = x.shape[0]
    cols, OH, OW = im2col_nhwc(x, kh, kw, stride)
    y = pallas_matmul_bias(cols, w_flat, b, relu=True, out_dtype=jnp.bfloat16)
    return y[:, :cout].reshape(B, OH, OW, cout)


def dueling_dqn_forward(x, params, n_actions):
    # x arrives NCHW (PyTorch convention); one transpose to NHWC, then bf16.
    x = jnp.transpose(x, (0, 2, 3, 1)).astype(jnp.bfloat16)
    x = conv2d_relu_nhwc(x, params['conv1_w'], params['conv1_b'], 8, 8, 4, 32)
    x = conv2d_relu_nhwc(x, params['conv2_w'], params['conv2_b'], 4, 4, 2, 64)
    x = conv2d_relu_nhwc(x, params['conv3_w'], params['conv3_b'], 3, 3, 1, 64)
    B = x.shape[0]
    # NHWC flatten; fc1 weights are stored in matching (H, W, C) row order
    # (a one-time permutation of PyTorch's (C, H, W) flatten).
    feat = x.reshape(B, -1)
    return pallas_dueling_head(
        feat,
        params['fc1_w'], params['fc1_b'],
        params['fc2_w'], params['fc2_b'],
        n_actions,
    )


def init_params(key, in_channels, conv_out, n_actions):
    def draw(k, shape, scale=0.05):
        return scale * jax.random.normal(k, shape, dtype=jnp.float32)

    ks = jax.random.split(key, 14)

    def conv_w(k, cin, kh, kw, cout):
        w = draw(k, (kh * kw * cin, cout))
        w = jnp.pad(w, ((0, 0), (0, _round_up(cout, LANE) - cout)))
        return w.astype(jnp.bfloat16)

    def conv_b(k, cout):
        b = draw(k, (1, cout))
        return jnp.pad(b, ((0, 0), (0, _round_up(cout, LANE) - cout)))  # f32

    HID = 512
    wa1 = draw(ks[6], (conv_out, HID))
    ba1 = draw(ks[7], (HID,))
    wa2 = draw(ks[8], (HID, n_actions))
    ba2 = draw(ks[9], (n_actions,))
    wv1 = draw(ks[10], (conv_out, HID))
    bv1 = draw(ks[11], (HID,))
    wv2 = draw(ks[12], (HID, 1))
    bv2 = draw(ks[13], (1,))

    NP = _round_up(n_actions + 1, LANE)
    # Merged hidden layer: [adv_hidden | val_hidden].
    w1 = jnp.concatenate([wa1, wv1], axis=1)            # (F, 1024)
    b1 = jnp.concatenate([ba1, bv1])[None, :]           # (1, 1024)
    # Merged second layer: block-diagonal, zero-padded to lane-dense width.
    w2 = jnp.zeros((2 * HID, NP), jnp.float32)
    w2 = w2.at[:HID, :n_actions].set(wa2)
    w2 = w2.at[HID:, n_actions].set(wv2[:, 0])
    b2 = jnp.zeros((1, NP), jnp.float32)
    b2 = b2.at[0, :n_actions].set(ba2)
    b2 = b2.at[0, n_actions].set(bv2[0])

    return {
        'conv1_w': conv_w(ks[0], in_channels, 8, 8, 32),
        'conv1_b': conv_b(ks[1], 32),
        'conv2_w': conv_w(ks[2], 32, 4, 4, 64),
        'conv2_b': conv_b(ks[3], 64),
        'conv3_w': conv_w(ks[4], 64, 3, 3, 64),
        'conv3_b': conv_b(ks[5], 64),
        'fc1_w': w1.astype(jnp.bfloat16),
        'fc1_b': b1,
        'fc2_w': w2.astype(jnp.bfloat16),
        'fc2_b': b2,
    }


if __name__ == "__main__":
    # Small shapes consistent with the conv stack (k8/s4 -> k4/s2 -> k3/s1):
    # 36 -> 8 -> 3 -> 1  =>  conv_out = 64 * 1 * 1 = 64
    B, C, HW = 2, 4, 36
    n_actions = 6
    conv_out = 64 * 1 * 1

    key = jax.random.PRNGKey(0)
    kx, kp = jax.random.split(key)
    x = jax.random.normal(kx, (B, C, HW, HW), dtype=jnp.float32)
    params = init_params(kp, C, conv_out, n_actions)

    fwd = jax.jit(dueling_dqn_forward, static_argnums=2)
    q = fwd(x, params, n_actions)
    q = jax.block_until_ready(q)
    assert q.shape == (B, n_actions) and q.dtype == jnp.float32
    print("KERNEL_OK")
</pallas_src>

<mosaic_0001>
module attributes {stable_mosaic.version = 11 : i64} {
  func.func @_matmul_bias_act_kernel(%arg0: i32, %arg1: memref<128x256xbf16, #tpu.memory_space<vmem>>, %arg2: memref<256x128xbf16, #tpu.memory_space<vmem>>, %arg3: memref<1x128xf32, #tpu.memory_space<vmem>>, %arg4: memref<128x128xbf16, #tpu.memory_space<vmem>>) attributes {dimension_semantics = [#tpu.dimension_semantics<parallel>], iteration_bounds = array<i64: 1>, scalar_prefetch = 0 : i64, scratch_operands = 0 : i64, tpu.core_type = #tpu.core_type<tc>, window_params = [{transform_indices = @transform_0, window_bounds = array<i64: 128, 256>}, {pipeline_mode = #tpu.pipeline_mode<synchronous>, transform_indices = @transform_1, window_bounds = array<i64: 256, 128>}, {pipeline_mode = #tpu.pipeline_mode<synchronous>, transform_indices = @transform_2, window_bounds = array<i64: 1, 128>}, {transform_indices = @transform_3, window_bounds = array<i64: 128, 128>}]} {
    %c0 = arith.constant 0 : index
    %c0_0 = arith.constant 0 : index
    %0 = vector.load %arg1[%c0, %c0_0] : memref<128x256xbf16, #tpu.memory_space<vmem>>, vector<128x256xbf16>
    %c0_1 = arith.constant 0 : index
    %c0_2 = arith.constant 0 : index
    %1 = vector.load %arg2[%c0_1, %c0_2] : memref<256x128xbf16, #tpu.memory_space<vmem>>, vector<256x128xbf16>
    %cst = arith.constant dense<0.000000e+00> : vector<128x128xf32>
    %2 = tpu.matmul %0, %1, %cst {dimension_numbers = #tpu.dot_dimension_numbers<[1], [0], [0], [1], [0, 0, 1, 1], [], []>} : vector<128x256xbf16>, vector<256x128xbf16>, vector<128x128xf32> -> vector<128x128xf32>
    %c0_3 = arith.constant 0 : index
    %c0_4 = arith.constant 0 : index
    %3 = vector.load %arg3[%c0_3, %c0_4] : memref<1x128xf32, #tpu.memory_space<vmem>>, vector<1x128xf32>
    %4 = vector.broadcast %3 : vector<1x128xf32> to vector<128x128xf32>
    %5 = arith.addf %2, %4 : vector<128x128xf32>
    %cst_5 = arith.constant 0.000000e+00 : f32
    %6 = vector.broadcast %cst_5 : f32 to vector<128x128xf32>
    %7 = arith.maximumf %5, %6 : vector<128x128xf32>
    %8 = arith.truncf %7 : vector<128x128xf32> to vector<128x128xbf16>
    %c0_6 = arith.constant 0 : index
    %c0_7 = arith.constant 0 : index
    %9 = vector.load %arg4[%c0_6, %c0_7] : memref<128x128xbf16, #tpu.memory_space<vmem>>, vector<128x128xbf16>
    tpu.vector_store %arg4[%c0_6, %c0_7], %8 {strides = array<i32>} : memref<128x128xbf16, #tpu.memory_space<vmem>>, vector<128x128xbf16>,
    return
  }
  func.func @transform_0(%arg0: i32) -> (i32, i32) {
    %c0_i32 = arith.constant 0 : i32
    %c0_i32_0 = arith.constant 0 : i32
    return %arg0, %c0_i32 : i32, i32
  }
  func.func @transform_1(%arg0: i32) -> (i32, i32) {
    %c0_i32 = arith.constant 0 : i32
    %c0_i32_0 = arith.constant 0 : i32
    %c0_i32_1 = arith.constant 0 : i32
    return %c0_i32, %c0_i32_0 : i32, i32
  }
  func.func @transform_2(%arg0: i32) -> (i32, i32) {
    %c0_i32 = arith.constant 0 : i32
    %c0_i32_0 = arith.constant 0 : i32
    %c0_i32_1 = arith.constant 0 : i32
    return %c0_i32, %c0_i32_0 : i32, i32
  }
  func.func @transform_3(%arg0: i32) -> (i32, i32) {
    %c0_i32 = arith.constant 0 : i32
    %c0_i32_0 = arith.constant 0 : i32
    return %arg0, %c0_i32 : i32, i32
  }
}

module attributes {stable_mosaic.version = 11 : i64} {
  func.func @_matmul_bias_act_kernel(%arg0: i32, %arg1: memref<32x512xbf16, #tpu.memory_space<vmem>>, %arg2: memref<512x128xbf16, #tpu.memory_space<vmem>>, %arg3: memref<1x128xf32, #tpu.memory_space<vmem>>, %arg4: memref<32x128xbf16, #tpu.memory_space<vmem>>) attributes {dimension_semantics = [#tpu.dimension_semantics<parallel>], iteration_bounds = array<i64: 1>, scalar_prefetch = 0 : i64, scratch_operands = 0 : i64, tpu.core_type = #tpu.core_type<tc>, window_params = [{transform_indices = @transform_0, window_bounds = array<i64: 32, 512>}, {pipeline_mode = #tpu.pipeline_mode<synchronous>, transform_indices = @transform_1, window_bounds = array<i64: 512, 128>}, {pipeline_mode = #tpu.pipeline_mode<synchronous>, transform_indices = @transform_2, window_bounds = array<i64: 1, 128>}, {transform_indices = @transform_3, window_bounds = array<i64: 32, 128>}]} {
    %c0 = arith.constant 0 : index
    %c0_0 = arith.constant 0 : index
    %0 = vector.load %arg1[%c0, %c0_0] : memref<32x512xbf16, #tpu.memory_space<vmem>>, vector<32x512xbf16>
    %c0_1 = arith.constant 0 : index
    %c0_2 = arith.constant 0 : index
    %1 = vector.load %arg2[%c0_1, %c0_2] : memref<512x128xbf16, #tpu.memory_space<vmem>>, vector<512x128xbf16>
    %cst = arith.constant dense<0.000000e+00> : vector<32x128xf32>
    %2 = tpu.matmul %0, %1, %cst {dimension_numbers = #tpu.dot_dimension_numbers<[1], [0], [0], [1], [0, 0, 1, 1], [], []>} : vector<32x512xbf16>, vector<512x128xbf16>, vector<32x128xf32> -> vector<32x128xf32>
    %c0_3 = arith.constant 0 : index
    %c0_4 = arith.constant 0 : index
    %3 = vector.load %arg3[%c0_3, %c0_4] : memref<1x128xf32, #tpu.memory_space<vmem>>, vector<1x128xf32>
    %4 = vector.broadcast %3 : vector<1x128xf32> to vector<32x128xf32>
    %5 = arith.addf %2, %4 : vector<32x128xf32>
    %cst_5 = arith.constant 0.000000e+00 : f32
    %6 = vector.broadcast %cst_5 : f32 to vector<32x128xf32>
    %7 = arith.maximumf %5, %6 : vector<32x128xf32>
    %8 = arith.truncf %7 : vector<32x128xf32> to vector<32x128xbf16>
    %c0_6 = arith.constant 0 : index
    %c0_7 = arith.constant 0 : index
    %9 = vector.load %arg4[%c0_6, %c0_7] : memref<32x128xbf16, #tpu.memory_space<vmem>>, vector<32x128xbf16>
    tpu.vector_store %arg4[%c0_6, %c0_7], %8 {strides = array<i32>} : memref<32x128xbf16, #tpu.memory_space<vmem>>, vector<32x128xbf16>,
    return
  }
  func.func @transform_0(%arg0: i32) -> (i32, i32) {
    %c0_i32 = arith.constant 0 : i32
    %c0_i32_0 = arith.constant 0 : i32
    return %arg0, %c0_i32 : i32, i32
  }
  func.func @transform_1(%arg0: i32) -> (i32, i32) {
    %c0_i32 = arith.constant 0 : i32
    %c0_i32_0 = arith.constant 0 : i32
    %c0_i32_1 = arith.constant 0 : i32
    return %c0_i32, %c0_i32_0 : i32, i32
  }
  func.func @transform_2(%arg0: i32) -> (i32, i32) {
    %c0_i32 = arith.constant 0 : i32
    %c0_i32_0 = arith.constant 0 : i32
    %c0_i32_1 = arith.constant 0 : i32
    return %c0_i32, %c0_i32_0 : i32, i32
  }
  func.func @transform_3(%arg0: i32) -> (i32, i32) {
    %c0_i32 = arith.constant 0 : i32
    %c0_i32_0 = arith.constant 0 : i32
    return %arg0, %c0_i32 : i32, i32
  }
}

module attributes {stable_mosaic.version = 11 : i64} {
  func.func @_matmul_bias_act_kernel(%arg0: i32, %arg1: memref<16x576xbf16, #tpu.memory_space<vmem>>, %arg2: memref<576x128xbf16, #tpu.memory_space<vmem>>, %arg3: memref<1x128xf32, #tpu.memory_space<vmem>>, %arg4: memref<16x128xbf16, #tpu.memory_space<vmem>>) attributes {dimension_semantics = [#tpu.dimension_semantics<parallel>], iteration_bounds = array<i64: 1>, scalar_prefetch = 0 : i64, scratch_operands = 0 : i64, tpu.core_type = #tpu.core_type<tc>, window_params = [{transform_indices = @transform_0, window_bounds = array<i64: 16, 576>}, {pipeline_mode = #tpu.pipeline_mode<synchronous>, transform_indices = @transform_1, window_bounds = array<i64: 576, 128>}, {pipeline_mode = #tpu.pipeline_mode<synchronous>, transform_indices = @transform_2, window_bounds = array<i64: 1, 128>}, {transform_indices = @transform_3, window_bounds = array<i64: 16, 128>}]} {
    %c0 = arith.constant 0 : index
    %c0_0 = arith.constant 0 : index
    %0 = vector.load %arg1[%c0, %c0_0] : memref<16x576xbf16, #tpu.memory_space<vmem>>, vector<16x576xbf16>
    %c0_1 = arith.constant 0 : index
    %c0_2 = arith.constant 0 : index
    %1 = vector.load %arg2[%c0_1, %c0_2] : memref<576x128xbf16, #tpu.memory_space<vmem>>, vector<576x128xbf16>
    %cst = arith.constant dense<0.000000e+00> : vector<16x128xf32>
    %2 = tpu.matmul %0, %1, %cst {dimension_numbers = #tpu.dot_dimension_numbers<[1], [0], [0], [1], [0, 0, 1, 1], [], []>} : vector<16x576xbf16>, vector<576x128xbf16>, vector<16x128xf32> -> vector<16x128xf32>
    %c0_3 = arith.constant 0 : index
    %c0_4 = arith.constant 0 : index
    %3 = vector.load %arg3[%c0_3, %c0_4] : memref<1x128xf32, #tpu.memory_space<vmem>>, vector<1x128xf32>
    %4 = vector.broadcast %3 : vector<1x128xf32> to vector<16x128xf32>
    %5 = arith.addf %2, %4 : vector<16x128xf32>
    %cst_5 = arith.constant 0.000000e+00 : f32
    %6 = vector.broadcast %cst_5 : f32 to vector<16x128xf32>
    %7 = arith.maximumf %5, %6 : vector<16x128xf32>
    %8 = arith.truncf %7 : vector<16x128xf32> to vector<16x128xbf16>
    %c0_6 = arith.constant 0 : index
    %c0_7 = arith.constant 0 : index
    %9 = vector.load %arg4[%c0_6, %c0_7] : memref<16x128xbf16, #tpu.memory_space<vmem>>, vector<16x128xbf16>
    tpu.vector_store %arg4[%c0_6, %c0_7], %8 {strides = array<i32>} : memref<16x128xbf16, #tpu.memory_space<vmem>>, vector<16x128xbf16>,
    return
  }
  func.func @transform_0(%arg0: i32) -> (i32, i32) {
    %c0_i32 = arith.constant 0 : i32
    %c0_i32_0 = arith.constant 0 : i32
    return %arg0, %c0_i32 : i32, i32
  }
  func.func @transform_1(%arg0: i32) -> (i32, i32) {
    %c0_i32 = arith.constant 0 : i32
    %c0_i32_0 = arith.constant 0 : i32
    %c0_i32_1 = arith.constant 0 : i32
    return %c0_i32, %c0_i32_0 : i32, i32
  }
  func.func @transform_2(%arg0: i32) -> (i32, i32) {
    %c0_i32 = arith.constant 0 : i32
    %c0_i32_0 = arith.constant 0 : i32
    %c0_i32_1 = arith.constant 0 : i32
    return %c0_i32, %c0_i32_0 : i32, i32
  }
  func.func @transform_3(%arg0: i32) -> (i32, i32) {
    %c0_i32 = arith.constant 0 : i32
    %c0_i32_0 = arith.constant 0 : i32
    return %arg0, %c0_i32 : i32, i32
  }
}

module attributes {stable_mosaic.version = 11 : i64} {
  func.func @_dueling_head_kernel(%arg0: i32, %arg1: memref<16x64xbf16, #tpu.memory_space<vmem>>, %arg2: memref<64x1024xbf16, #tpu.memory_space<vmem>>, %arg3: memref<1x1024xf32, #tpu.memory_space<vmem>>, %arg4: memref<1024x128xbf16, #tpu.memory_space<vmem>>, %arg5: memref<1x128xf32, #tpu.memory_space<vmem>>, %arg6: memref<16x128xf32, #tpu.memory_space<vmem>>) attributes {dimension_semantics = [#tpu.dimension_semantics<parallel>], iteration_bounds = array<i64: 1>, scalar_prefetch = 0 : i64, scratch_operands = 0 : i64, tpu.core_type = #tpu.core_type<tc>, window_params = [{transform_indices = @transform_0, window_bounds = array<i64: 16, 64>}, {pipeline_mode = #tpu.pipeline_mode<synchronous>, transform_indices = @transform_1, window_bounds = array<i64: 64, 1024>}, {pipeline_mode = #tpu.pipeline_mode<synchronous>, transform_indices = @transform_2, window_bounds = array<i64: 1, 1024>}, {pipeline_mode = #tpu.pipeline_mode<synchronous>, transform_indices = @transform_3, window_bounds = array<i64: 1024, 128>}, {pipeline_mode = #tpu.pipeline_mode<synchronous>, transform_indices = @transform_4, window_bounds = array<i64: 1, 128>}, {transform_indices = @transform_5, window_bounds = array<i64: 16, 128>}]} {
    %c0 = arith.constant 0 : index
    %c0_0 = arith.constant 0 : index
    %0 = vector.load %arg1[%c0, %c0_0] : memref<16x64xbf16, #tpu.memory_space<vmem>>, vector<16x64xbf16>
    %c0_1 = arith.constant 0 : index
    %c0_2 = arith.constant 0 : index
    %1 = vector.load %arg2[%c0_1, %c0_2] : memref<64x1024xbf16, #tpu.memory_space<vmem>>, vector<64x1024xbf16>
    %cst = arith.constant dense<0.000000e+00> : vector<16x1024xf32>
    %2 = tpu.matmul %0, %1, %cst {dimension_numbers = #tpu.dot_dimension_numbers<[1], [0], [0], [1], [0, 0, 1, 1], [], []>} : vector<16x64xbf16>, vector<64x1024xbf16>, vector<16x1024xf32> -> vector<16x1024xf32>
    %c0_3 = arith.constant 0 : index
    %c0_4 = arith.constant 0 : index
    %3 = vector.load %arg3[%c0_3, %c0_4] : memref<1x1024xf32, #tpu.memory_space<vmem>>, vector<1x1024xf32>
    %4 = vector.broadcast %3 : vector<1x1024xf32> to vector<16x1024xf32>
    %5 = arith.addf %2, %4 : vector<16x1024xf32>
    %cst_5 = arith.constant 0.000000e+00 : f32
    %6 = vector.broadcast %cst_5 : f32 to vector<16x1024xf32>
    %7 = arith.maximumf %5, %6 : vector<16x1024xf32>
    %8 = arith.truncf %7 : vector<16x1024xf32> to vector<16x1024xbf16>
    %c0_6 = arith.constant 0 : index
    %c0_7 = arith.constant 0 : index
    %9 = vector.load %arg4[%c0_6, %c0_7] : memref<1024x128xbf16, #tpu.memory_space<vmem>>, vector<1024x128xbf16>
    %cst_8 = arith.constant dense<0.000000e+00> : vector<16x128xf32>
    %10 = tpu.matmul %8, %9, %cst_8 {dimension_numbers = #tpu.dot_dimension_numbers<[1], [0], [0], [1], [0, 0, 1, 1], [], []>} : vector<16x1024xbf16>, vector<1024x128xbf16>, vector<16x128xf32> -> vector<16x128xf32>
    %c0_9 = arith.constant 0 : index
    %c0_10 = arith.constant 0 : index
    %11 = vector.load %arg5[%c0_9, %c0_10] : memref<1x128xf32, #tpu.memory_space<vmem>>, vector<1x128xf32>
    %12 = vector.broadcast %11 : vector<1x128xf32> to vector<16x128xf32>
    %13 = arith.addf %10, %12 : vector<16x128xf32>
    %14 = tpu.iota {dimensions = array<i32: 1>} : vector<16x128xi32>
    %c6_i32 = arith.constant 6 : i32
    %15 = vector.broadcast %c6_i32 : i32 to vector<16x128xi32>
    %16 = arith.cmpi slt, %14, %15 : vector<16x128xi32>
    %17 = arith.extui %16 : vector<16x128xi1> to vector<16x128xi32>
    %18 = arith.sitofp %17 : vector<16x128xi32> to vector<16x128xf32>
    %c6_i32_11 = arith.constant 6 : i32
    %19 = vector.broadcast %c6_i32_11 : i32 to vector<16x128xi32>
    %20 = arith.cmpi eq, %14, %19 : vector<16x128xi32>
    %21 = arith.extui %20 : vector<16x128xi1> to vector<16x128xi32>
    %22 = arith.sitofp %21 : vector<16x128xi32> to vector<16x128xf32>
    %23 = arith.mulf %13, %18 : vector<16x128xf32>
    %cst_12 = arith.constant dense<0.000000e+00> : vector<16xf32>
    %24 = vector.multi_reduction <add>, %23, %cst_12 [1] : vector<16x128xf32> to vector<16xf32>
    %25 = vector.shape_cast %24 : vector<16xf32> to vector<16x1xf32>
    %cst_13 = arith.constant 0.166666672 : f32
    %26 = vector.broadcast %cst_13 : f32 to vector<16x1xf32>
    %27 = arith.mulf %25, %26 : vector<16x1xf32>
    %28 = arith.mulf %13, %22 : vector<16x128xf32>
    %cst_14 = arith.constant dense<0.000000e+00> : vector<16xf32>
    %29 = vector.multi_reduction <add>, %28, %cst_14 [1] : vector<16x128xf32> to vector<16xf32>
    %30 = vector.shape_cast %29 : vector<16xf32> to vector<16x1xf32>
    %31 = vector.broadcast %30 : vector<16x1xf32> to vector<16x128xf32>
    %32 = arith.addf %13, %31 : vector<16x128xf32>
    %33 = vector.broadcast %27 : vector<16x1xf32> to vector<16x128xf32>
    %34 = arith.subf %32, %33 : vector<16x128xf32>
    %c0_15 = arith.constant 0 : index
    %c0_16 = arith.constant 0 : index
    %35 = vector.load %arg6[%c0_15, %c0_16] : memref<16x128xf32, #tpu.memory_space<vmem>>, vector<16x128xf32>
    tpu.vector_store %arg6[%c0_15, %c0_16], %34 {strides = array<i32>} : memref<16x128xf32, #tpu.memory_space<vmem>>, vector<16x128xf32>,
    return
  }
  func.func @transform_0(%arg0: i32) -> (i32, i32) {
    %c0_i32 = arith.constant 0 : i32
    %c0_i32_0 = arith.constant 0 : i32
    return %arg0, %c0_i32 : i32, i32
  }
  func.func @transform_1(%arg0: i32) -> (i32, i32) {
    %c0_i32 = arith.constant 0 : i32
    %c0_i32_0 = arith.constant 0 : i32
    %c0_i32_1 = arith.constant 0 : i32
    return %c0_i32, %c0_i32_0 : i32, i32
  }
  func.func @transform_2(%arg0: i32) -> (i32, i32) {
    %c0_i32 = arith.constant 0 : i32
    %c0_i32_0 = arith.constant 0 : i32
    %c0_i32_1 = arith.constant 0 : i32
    return %c0_i32, %c0_i32_0 : i32, i32
  }
  func.func @transform_3(%arg0: i32) -> (i32, i32) {
    %c0_i32 = arith.constant 0 : i32
    %c0_i32_0 = arith.constant 0 : i32
    %c0_i32_1 = arith.constant 0 : i32
    return %c0_i32, %c0_i32_0 : i32, i32
  }
  func.func @transform_4(%arg0: i32) -> (i32, i32) {
    %c0_i32 = arith.constant 0 : i32
    %c0_i32_0 = arith.constant 0 : i32
    %c0_i32_1 = arith.constant 0 : i32
    return %c0_i32, %c0_i32_0 : i32, i32
  }
  func.func @transform_5(%arg0: i32) -> (i32, i32) {
    %c0_i32 = arith.constant 0 : i32
    %c0_i32_0 = arith.constant 0 : i32
    return %arg0, %c0_i32 : i32, i32
  }
}

</mosaic_0001>

<llo_original>
// kernel: dueling_dqn_forward.4
$region0: #{dueling_dqn_forward.4}
  #allocation0 [shape = 'u32[]', space=smem, size = 0x4, offset = 0x4, fixed_abs, tag = 'smem constant byte address 0x4 - core index']
  #allocation1 [shape = 'u32[144,128]{1,0:T(1,128)}', space=vmem, size = 0x12000, scoped, tag = 'internal scratch']
  %s0 = inlined_call_operand.vmem [shape: bf16[128,256], index: 0, kind: input, shape index: {}]
  %s1 = inlined_call_operand.vmem [shape: bf16[256,128], index: 1, kind: input, shape index: {}]
  %s2 = inlined_call_operand.vmem [shape: f32[1,128], index: 2, kind: input, shape index: {}]
  %s3 = inlined_call_operand.vmem [shape: bf16[128,128], index: 3, kind: output, shape index: {}]
  %s4 = sld [smem:[#allocation0]]
  $region22: #{dueling_dqn_forward.4} parent=0
    _
  %s6 = ssub.s32 1, %s4
  %s7 = scalar_select 0, %s6, %s4
  // Predicated region
  $region2: #{dueling_dqn_forward.4} parent=0 // pred_check
    _
  $region3: #{dueling_dqn_forward.4} parent=0 // pred_check_branch
    %9 = sbr.rel (0) target = $region5
  $region4: #{dueling_dqn_forward.4} parent=0 // pred_region
    _
  $region5: #{dueling_dqn_forward.4} parent=0 // pred_fallthru
    _
  // Predicated region
  $region6: #{dueling_dqn_forward.4} parent=0 // pred_check
    _
  $region7: #{dueling_dqn_forward.4} parent=0 // pred_check_branch
    %11 = sbr.rel (0) target = $region9
  $region8: #{dueling_dqn_forward.4} parent=0 // pred_region
    _
  $region9: #{dueling_dqn_forward.4} parent=0 // pred_fallthru
    _
  // Predicated region
  $region10: #{dueling_dqn_forward.4} parent=0 // pred_check
    _
  $region11: #{dueling_dqn_forward.4} parent=0 // pred_check_branch
    %13 = sbr.rel (0) target = $region13
  $region12: #{dueling_dqn_forward.4} parent=0 // pred_region
    _
  $region13: #{dueling_dqn_forward.4} parent=0 // pred_fallthru
    _
  %v15 = vld [vmem:[%s0] sm:$0xff]
  %v16 = vld [vmem:[%s0 + $0x8] sm:$0xff]
  %v17 = vld [vmem:[%s0 + $0x10] sm:$0xff]
  %v18 = vld [vmem:[%s0 + $0x18] sm:$0xff]
  %v19 = vld [vmem:[%s0 + $0x20] sm:$0xff]
  %v20 = vld [vmem:[%s0 + $0x28] sm:$0xff]
  %v21 = vld [vmem:[%s0 + $0x30] sm:$0xff]
  %v22 = vld [vmem:[%s0 + $0x38] sm:$0xff]
  %v23 = vld [vmem:[%s0 + $0x40] sm:$0xff]
  %v24 = vld [vmem:[%s0 + $0x48] sm:$0xff]
  %v25 = vld [vmem:[%s0 + $0x50] sm:$0xff]
  %v26 = vld [vmem:[%s0 + $0x58] sm:$0xff]
  %v27 = vld [vmem:[%s0 + $0x60] sm:$0xff]
  %v28 = vld [vmem:[%s0 + $0x68] sm:$0xff]
  %v29 = vld [vmem:[%s0 + $0x70] sm:$0xff]
  %v30 = vld [vmem:[%s0 + $0x78] sm:$0xff]
  %v31 = vld [vmem:[%s1] sm:$0xf]
  %v32 = vld [vmem:[%s1 + $0x4] sm:$0xf]
  %v33 = vld [vmem:[%s1 + $0x8] sm:$0xf]
  %v34 = vld [vmem:[%s1 + $0xc] sm:$0xf]
  %v35 = vld [vmem:[%s1 + $0x10] sm:$0xf]
  %v36 = vld [vmem:[%s1 + $0x14] sm:$0xf]
  %v37 = vld [vmem:[%s1 + $0x18] sm:$0xf]
  %v38 = vld [vmem:[%s1 + $0x1c] sm:$0xf]
  %v39 = vld [vmem:[%s1 + $0x20] sm:$0xf]
  %v40 = vld [vmem:[%s1 + $0x24] sm:$0xf]
  %v41 = vld [vmem:[%s1 + $0x28] sm:$0xf]
  %v42 = vld [vmem:[%s1 + $0x2c] sm:$0xf]
  %v43 = vld [vmem:[%s1 + $0x30] sm:$0xf]
  %v44 = vld [vmem:[%s1 + $0x34] sm:$0xf]
  %v45 = vld [vmem:[%s1 + $0x38] sm:$0xf]
  %v46 = vld [vmem:[%s1 + $0x3c] sm:$0xf]
  %v47 = vld [vmem:[%s1 + $0x40] sm:$0xf]
  %v48 = vld [vmem:[%s1 + $0x44] sm:$0xf]
  %v49 = vld [vmem:[%s1 + $0x48] sm:$0xf]
  %v50 = vld [vmem:[%s1 + $0x4c] sm:$0xf]
  %v51 = vld [vmem:[%s1 + $0x50] sm:$0xf]
  %v52 = vld [vmem:[%s1 + $0x54] sm:$0xf]
  %v53 = vld [vmem:[%s1 + $0x58] sm:$0xf]
  %v54 = vld [vmem:[%s1 + $0x5c] sm:$0xf]
  %v55 = vld [vmem:[%s1 + $0x60] sm:$0xf]
  %v56 = vld [vmem:[%s1 + $0x64] sm:$0xf]
  %v57 = vld [vmem:[%s1 + $0x68] sm:$0xf]
  %v58 = vld [vmem:[%s1 + $0x6c] sm:$0xf]
  %v59 = vld [vmem:[%s1 + $0x70] sm:$0xf]
  %v60 = vld [vmem:[%s1 + $0x74] sm:$0xf]
  %v61 = vld [vmem:[%s1 + $0x78] sm:$0xf]
  %v62 = vld [vmem:[%s1 + $0x7c] sm:$0xf]
  %v63 = vld [vmem:[%s2] sm:$0x1]
  %v65 = vlaneseq
  %v66 = vshrl.u32 %v65, 7
  %v67 = vsub.s32 0, %v66
  %v68 = vrot.slane %v63, %v67
  %v86 = vunpack.c.l.b16 %v15
  %v87 = vunpack.c.h.b16 %v15
  %v88 = vunpack.c.l.b16 %v16
  %v89 = vunpack.c.h.b16 %v16
  %v90 = vunpack.c.l.b16 %v17
  %v91 = vunpack.c.h.b16 %v17
  %v92 = vunpack.c.l.b16 %v18
  %v93 = vunpack.c.h.b16 %v18
  %v94 = vunpack.c.l.b16 %v19
  %v95 = vunpack.c.h.b16 %v19
  %v96 = vunpack.c.l.b16 %v20
  %v97 = vunpack.c.h.b16 %v20
  %v98 = vunpack.c.l.b16 %v21
  %v99 = vunpack.c.h.b16 %v21
  %v100 = vunpack.c.l.b16 %v22
  %v101 = vunpack.c.h.b16 %v22
  %v102 = vunpack.c.l.b16 %v23
  %v103 = vunpack.c.h.b16 %v23
  %v104 = vunpack.c.l.b16 %v24
  %v105 = vunpack.c.h.b16 %v24
  %v106 = vunpack.c.l.b16 %v25
  %v107 = vunpack.c.h.b16 %v25
  %v108 = vunpack.c.l.b16 %v26
  %v109 = vunpack.c.h.b16 %v26
  %v110 = vunpack.c.l.b16 %v27
  %v111 = vunpack.c.h.b16 %v27
  %v112 = vunpack.c.l.b16 %v28
  %v113 = vunpack.c.h.b16 %v28
  %v114 = vunpack.c.l.b16 %v29
  %v115 = vunpack.c.h.b16 %v29
  %v116 = vunpack.c.l.b16 %v30
  %v117 = vunpack.c.h.b16 %v30
  %v118 = vpack.c.b16 %v88, %v86
  %v119 = vpack.c.b16 %v89, %v87
  %v120 = vpack.c.b16 %v92, %v90
  %v121 = vpack.c.b16 %v93, %v91
  %v122 = vpack.c.b16 %v96, %v94
  %v123 = vpack.c.b16 %v97, %v95
  %v124 = vpack.c.b16 %v100, %v98
  %v125 = vpack.c.b16 %v101, %v99
  %v126 = vpack.c.b16 %v104, %v102
  %v127 = vpack.c.b16 %v105, %v103
  %v128 = vpack.c.b16 %v108, %v106
  %v129 = vpack.c.b16 %v109, %v107
  %v130 = vpack.c.b16 %v112, %v110
  %v131 = vpack.c.b16 %v113, %v111
  %v132 = vpack.c.b16 %v116, %v114
  %v133 = vpack.c.b16 %v117, %v115
  %v182 = vunpack.c.l.b16 %v31
  %v183 = vunpack.c.l.b16 %v32
  %v184 = vunpack.c.l.b16 %v33
  %v185 = vunpack.c.l.b16 %v34
  %v186 = vunpack.c.l.b16 %v35
  %v187 = vunpack.c.l.b16 %v36
  %v188 = vunpack.c.l.b16 %v37
  %v189 = vunpack.c.l.b16 %v38
  %v190 = vunpack.c.l.b16 %v39
  %v191 = vunpack.c.l.b16 %v40
  %v192 = vunpack.c.l.b16 %v41
  %v193 = vunpack.c.l.b16 %v42
  %v194 = vunpack.c.l.b16 %v43
  %v195 = vunpack.c.l.b16 %v44
  %v196 = vunpack.c.l.b16 %v45
  %v197 = vunpack.c.l.b16 %v46
  %v198 = vunpack.c.l.b16 %v47
  %v199 = vunpack.c.l.b16 %v48
  %v200 = vunpack.c.l.b16 %v49
  %v201 = vunpack.c.l.b16 %v50
  %v202 = vunpack.c.l.b16 %v51
  %v203 = vunpack.c.l.b16 %v52
  %v204 = vunpack.c.l.b16 %v53
  %v205 = vunpack.c.l.b16 %v54
  %v206 = vunpack.c.l.b16 %v55
  %v207 = vunpack.c.l.b16 %v56
  %v208 = vunpack.c.l.b16 %v57
  %v209 = vunpack.c.l.b16 %v58
  %v210 = vunpack.c.l.b16 %v59
  %v211 = vunpack.c.l.b16 %v60
  %v212 = vunpack.c.l.b16 %v61
  %v213 = vunpack.c.l.b16 %v62
  %v214 = vpack.c.b16 %v183, %v182
  %v215 = vpack.c.b16 %v185, %v184
  %v216 = vpack.c.b16 %v187, %v186
  %v217 = vpack.c.b16 %v189, %v188
  %v218 = vpack.c.b16 %v191, %v190
  %v219 = vpack.c.b16 %v193, %v192
  %v220 = vpack.c.b16 %v195, %v194
  %v221 = vpack.c.b16 %v197, %v196
  %v222 = vpack.c.b16 %v199, %v198
  %v223 = vpack.c.b16 %v201, %v200
  %v224 = vpack.c.b16 %v203, %v202
  %v225 = vpack.c.b16 %v205, %v204
  %v226 = vpack.c.b16 %v207, %v206
  %v227 = vpack.c.b16 %v209, %v208
  %v228 = vpack.c.b16 %v211, %v210
  %v229 = vpack.c.b16 %v213, %v212
  %246 = vmatprep.subr.bf16.mxu0 0
  %247 = vmatpush1.bf16.msra.mxu0 %v214
  %248 = vmatprep.subr.bf16.mxu0 0
  %249 = vmatpush1.bf16.msra.mxu0 %v215
  %250 = vmatprep.subr.bf16.mxu0 0
  %251 = vmatpush1.bf16.msra.mxu0 %v216
  %252 = vmatprep.subr.bf16.mxu0 0
  %253 = vmatpush1.bf16.msra.mxu0 %v217
  %254 = vmatprep.subr.bf16.mxu0 0
  %255 = vmatpush1.bf16.msra.mxu0 %v218
  %256 = vmatprep.subr.bf16.mxu0 0
  %257 = vmatpush1.bf16.msra.mxu0 %v219
  %258 = vmatprep.subr.bf16.mxu0 0
  %259 = vmatpush1.bf16.msra.mxu0 %v220
  %260 = vmatprep.subr.bf16.mxu0 0
  %261 = vmatpush1.bf16.msra.mxu0 %v221
  %262 = vmatprep.subr.bf16.mxu0 0
  %263 = vmatpush1.bf16.msra.mxu0 %v222
  %264 = vmatprep.subr.bf16.mxu0 0
  %265 = vmatpush1.bf16.msra.mxu0 %v223
  %266 = vmatprep.subr.bf16.mxu0 0
  %267 = vmatpush1.bf16.msra.mxu0 %v224
  %268 = vmatprep.subr.bf16.mxu0 0
  %269 = vmatpush1.bf16.msra.mxu0 %v225
  %270 = vmatprep.subr.bf16.mxu0 0
  %271 = vmatpush1.bf16.msra.mxu0 %v226
  %272 = vmatprep.subr.bf16.mxu0 0
  %273 = vmatpush1.bf16.msra.mxu0 %v227
  %274 = vmatprep.subr.bf16.mxu0 0
  %275 = vmatpush1.bf16.msra.mxu0 %v228
  %276 = vmatprep.subr.bf16.mxu0 0
  %277 = vmatpush1.bf16.msra.mxu0 %v229
  %278 = vmatprep.mubr.bf16.mxu0 %v119
  %279 = vmatmul.mubr.bf16.gmra.mrb[0].mxu0 %v118
  %v280 = vpop.f32.mrb[0].mxu0
  %v281 = vadd.f32 %v68, %v280
  %v282 = vpop.f32.mrb[0].mxu0
  %v283 = vpop.f32.mrb[0].mxu0
  %v284 = vadd.f32 %v68, %v283
  %v285 = vpop.f32.mrb[0].mxu0
  %286 = vmatprep.mubr.bf16.mxu0 %v121
  %287 = vmatmul.mubr.bf16.gmra.mrb[0].mxu0 %v120
  %v288 = vpop.f32.mrb[0].mxu0
  %v289 = vadd.f32 %v68, %v288
  %v290 = vpop.f32.mrb[0].mxu0
  %v291 = vpop.f32.mrb[0].mxu0
  %v292 = vadd.f32 %v68, %v291
  %v293 = vpop.f32.mrb[0].mxu0
  %294 = vmatprep.mubr.bf16.mxu0 %v123
  %295 = vmatmul.mubr.bf16.gmra.mrb[0].mxu0 %v122
  %v296 = vpop.f32.mrb[0].mxu0
  %v297 = vadd.f32 %v68, %v296
  %v298 = vpop.f32.mrb[0].mxu0
  %v299 = vpop.f32.mrb[0].mxu0
  %v300 = vadd.f32 %v68, %v299
  %v301 = vpop.f32.mrb[0].mxu0
  %302 = vmatprep.mubr.bf16.mxu0 %v125
  %303 = vmatmul.mubr.bf16.gmra.mrb[0].mxu0 %v124
  %v304 = vpop.f32.mrb[0].mxu0
  %v305 = vadd.f32 %v68, %v304
  %v306 = vpop.f32.mrb[0].mxu0
  %v307 = vpop.f32.mrb[0].mxu0
  %v308 = vadd.f32 %v68, %v307
  %v309 = vpop.f32.mrb[0].mxu0
  %310 = vmatprep.mubr.bf16.mxu0 %v127
  %311 = vmatmul.mubr.bf16.gmra.mrb[0].mxu0 %v126
  %v312 = vpop.f32.mrb[0].mxu0
  %v313 = vadd.f32 %v68, %v312
  %v314 = vpop.f32.mrb[0].mxu0
  %v315 = vpop.f32.mrb[0].mxu0
  %v316 = vadd.f32 %v68, %v315
  %v317 = vpop.f32.mrb[0].mxu0
  %318 = vmatprep.mubr.bf16.mxu0 %v129
  %319 = vmatmul.mubr.bf16.gmra.mrb[0].mxu0 %v128
  %v320 = vpop.f32.mrb[0].mxu0
  %v321 = vadd.f32 %v68, %v320
  %v322 = vpop.f32.mrb[0].mxu0
  %v323 = vpop.f32.mrb[0].mxu0
  %v324 = vadd.f32 %v68, %v323
  %v325 = vpop.f32.mrb[0].mxu0
  %326 = vmatprep.mubr.bf16.mxu0 %v131
  %327 = vmatmul.mubr.bf16.gmra.mrb[0].mxu0 %v130
  %v328 = vpop.f32.mrb[0].mxu0
  %v329 = vadd.f32 %v68, %v328
  %v330 = vpop.f32.mrb[0].mxu0
  %v331 = vpop.f32.mrb[0].mxu0
  %v332 = vadd.f32 %v68, %v331
  %v333 = vpop.f32.mrb[0].mxu0
  %334 = vmatprep.mubr.bf16.mxu0 %v133
  %335 = vmatmul.mubr.bf16.gmra.mrb[0].mxu0 %v132
  %v336 = vpop.f32.mrb[0].mxu0
  %v337 = vadd.f32 %v68, %v336
  %v338 = vpop.f32.mrb[0].mxu0
  %v339 = vpop.f32.mrb[0].mxu0
  %v340 = vadd.f32 %v68, %v339
  %v341 = vpop.f32.mrb[0].mxu0
  %342 = vdwg.mxu0
  %v343 = vmax.f32 %v281, 0.0
  %v344 = vmax.f32 %v284, 0.0
  %v345 = vmax.f32 %v289, 0.0
  %v346 = vmax.f32 %v292, 0.0
  %v347 = vmax.f32 %v297, 0.0
  %v348 = vmax.f32 %v300, 0.0
  %v349 = vmax.f32 %v305, 0.0
  %v350 = vmax.f32 %v308, 0.0
  %v351 = vmax.f32 %v313, 0.0
  %v352 = vmax.f32 %v316, 0.0
  %v353 = vmax.f32 %v321, 0.0
  %v354 = vmax.f32 %v324, 0.0
  %v355 = vmax.f32 %v329, 0.0
  %v356 = vmax.f32 %v332, 0.0
  %v357 = vmax.f32 %v337, 0.0
  %v358 = vmax.f32 %v340, 0.0
  %v359 = vpack.c.bf16 %v344, %v343
  %v360 = vpack.c.bf16 %v346, %v345
  %v361 = vpack.c.bf16 %v348, %v347
  %v362 = vpack.c.bf16 %v350, %v349
  %v363 = vpack.c.bf16 %v352, %v351
  %v364 = vpack.c.bf16 %v354, %v353
  %v365 = vpack.c.bf16 %v356, %v355
  %v366 = vpack.c.bf16 %v358, %v357
  %v375 = vunpack.c.l.b16 %v359
  %v376 = vunpack.c.h.b16 %v359
  %v377 = vunpack.c.l.b16 %v360
  %v378 = vunpack.c.h.b16 %v360
  %v379 = vunpack.c.l.b16 %v361
  %v380 = vunpack.c.h.b16 %v361
  %v381 = vunpack.c.l.b16 %v362
  %v382 = vunpack.c.h.b16 %v362
  %v383 = vunpack.c.l.b16 %v363
  %v384 = vunpack.c.h.b16 %v363
  %v385 = vunpack.c.l.b16 %v364
  %v386 = vunpack.c.h.b16 %v364
  %v387 = vunpack.c.l.b16 %v365
  %v388 = vunpack.c.h.b16 %v365
  %v389 = vunpack.c.l.b16 %v366
  %v390 = vunpack.c.h.b16 %v366
  %v391 = vpack.c.b16 %v375, %v375
  %v392 = vpack.c.b16 %v376, %v376
  %v393 = vpack.c.b16 %v377, %v377
  %v394 = vpack.c.b16 %v378, %v378
  %v395 = vpack.c.b16 %v379, %v379
  %v396 = vpack.c.b16 %v380, %v380
  %v397 = vpack.c.b16 %v381, %v381
  %v398 = vpack.c.b16 %v382, %v382
  %v399 = vpack.c.b16 %v383, %v383
  %v400 = vpack.c.b16 %v384, %v384
  %v401 = vpack.c.b16 %v385, %v385
  %v402 = vpack.c.b16 %v386, %v386
  %v403 = vpack.c.b16 %v387, %v387
  %v404 = vpack.c.b16 %v388, %v388
  %v405 = vpack.c.b16 %v389, %v389
  %v406 = vpack.c.b16 %v390, %v390
  %423 = vst [vmem:[%s3] sm:$0xf] %v391
  %424 = vst [vmem:[%s3 + $0x4] sm:$0xf] %v392
  %425 = vst [vmem:[%s3 + $0x8] sm:$0xf] %v393
  %426 = vst [vmem:[%s3 + $0xc] sm:$0xf] %v394
  %427 = vst [vmem:[%s3 + $0x10] sm:$0xf] %v395
  %428 = vst [vmem:[%s3 + $0x14] sm:$0xf] %v396
  %429 = vst [vmem:[%s3 + $0x18] sm:$0xf] %v397
  %430 = vst [vmem:[%s3 + $0x1c] sm:$0xf] %v398
  %431 = vst [vmem:[%s3 + $0x20] sm:$0xf] %v399
  %432 = vst [vmem:[%s3 + $0x24] sm:$0xf] %v400
  %433 = vst [vmem:[%s3 + $0x28] sm:$0xf] %v401
  %434 = vst [vmem:[%s3 + $0x2c] sm:$0xf] %v402
  %435 = vst [vmem:[%s3 + $0x30] sm:$0xf] %v403
  %436 = vst [vmem:[%s3 + $0x34] sm:$0xf] %v404
  %437 = vst [vmem:[%s3 + $0x38] sm:$0xf] %v405
  %438 = vst [vmem:[%s3 + $0x3c] sm:$0xf] %v406
  // Predicated region
  $region14: #{dueling_dqn_forward.4} parent=0 // pred_check
    _
  $region15: #{dueling_dqn_forward.4} parent=0 // pred_check_branch
    %440 = sbr.rel (0) target = $region17
  $region16: #{dueling_dqn_forward.4} parent=0 // pred_region
    _
  $region17: #{dueling_dqn_forward.4} parent=0 // pred_fallthru
    _
  // Predicated region
  $region18: #{dueling_dqn_forward.4} parent=0 // pred_check
    _
  $region19: #{dueling_dqn_forward.4} parent=0 // pred_check_branch
    %442 = sbr.rel (0) target = $region21
  $region20: #{dueling_dqn_forward.4} parent=0 // pred_region
    _
  $region21: #{dueling_dqn_forward.4} parent=0 // pred_fallthru
    _

// kernel: dueling_dqn_forward.5
$region0: #{dueling_dqn_forward.5}
  #allocation0 [shape = 'u32[]', space=smem, size = 0x4, offset = 0x4, fixed_abs, tag = 'smem constant byte address 0x4 - core index']
  #allocation1 [shape = 'u32[144,128]{1,0:T(1,128)}', space=vmem, size = 0x12000, scoped, tag = 'internal scratch']
  %s0 = inlined_call_operand.vmem [shape: bf16[32,512], index: 0, kind: input, shape index: {}]
  %s1 = inlined_call_operand.vmem [shape: bf16[512,128], index: 1, kind: input, shape index: {}]
  %s2 = inlined_call_operand.vmem [shape: f32[1,128], index: 2, kind: input, shape index: {}]
  %s3 = inlined_call_operand.vmem [shape: bf16[32,128], index: 3, kind: output, shape index: {}]
  %s4 = sld [smem:[#allocation0]]
  $region22: #{dueling_dqn_forward.5} parent=0
    _
  %s6 = ssub.s32 1, %s4
  %s7 = scalar_select 0, %s6, %s4
  // Predicated region
  $region2: #{dueling_dqn_forward.5} parent=0 // pred_check
    _
  $region3: #{dueling_dqn_forward.5} parent=0 // pred_check_branch
    %9 = sbr.rel (0) target = $region5
  $region4: #{dueling_dqn_forward.5} parent=0 // pred_region
    _
  $region5: #{dueling_dqn_forward.5} parent=0 // pred_fallthru
    _
  // Predicated region
  $region6: #{dueling_dqn_forward.5} parent=0 // pred_check
    _
  $region7: #{dueling_dqn_forward.5} parent=0 // pred_check_branch
    %11 = sbr.rel (0) target = $region9
  $region8: #{dueling_dqn_forward.5} parent=0 // pred_region
    _
  $region9: #{dueling_dqn_forward.5} parent=0 // pred_fallthru
    _
  // Predicated region
  $region10: #{dueling_dqn_forward.5} parent=0 // pred_check
    _
  $region11: #{dueling_dqn_forward.5} parent=0 // pred_check_branch
    %13 = sbr.rel (0) target = $region13
  $region12: #{dueling_dqn_forward.5} parent=0 // pred_region
    _
  $region13: #{dueling_dqn_forward.5} parent=0 // pred_fallthru
    _
  %v15 = vld [vmem:[%s0] sm:$0xff]
  %v16 = vld [vmem:[%s0 + $0x8] sm:$0xff]
  %v17 = vld [vmem:[%s0 + $0x10] sm:$0xff]
  %v18 = vld [vmem:[%s0 + $0x18] sm:$0xff]
  %v19 = vld [vmem:[%s0 + $0x20] sm:$0xff]
  %v20 = vld [vmem:[%s0 + $0x28] sm:$0xff]
  %v21 = vld [vmem:[%s0 + $0x30] sm:$0xff]
  %v22 = vld [vmem:[%s0 + $0x38] sm:$0xff]
  %v23 = vld [vmem:[%s1] sm:$0xf]
  %v24 = vld [vmem:[%s1 + $0x4] sm:$0xf]
  %v25 = vld [vmem:[%s1 + $0x8] sm:$0xf]
  %v26 = vld [vmem:[%s1 + $0xc] sm:$0xf]
  %v27 = vld [vmem:[%s1 + $0x10] sm:$0xf]
  %v28 = vld [vmem:[%s1 + $0x14] sm:$0xf]
  %v29 = vld [vmem:[%s1 + $0x18] sm:$0xf]
  %v30 = vld [vmem:[%s1 + $0x1c] sm:$0xf]
  %v31 = vld [vmem:[%s1 + $0x20] sm:$0xf]
  %v32 = vld [vmem:[%s1 + $0x24] sm:$0xf]
  %v33 = vld [vmem:[%s1 + $0x28] sm:$0xf]
  %v34 = vld [vmem:[%s1 + $0x2c] sm:$0xf]
  %v35 = vld [vmem:[%s1 + $0x30] sm:$0xf]
  %v36 = vld [vmem:[%s1 + $0x34] sm:$0xf]
  %v37 = vld [vmem:[%s1 + $0x38] sm:$0xf]
  %v38 = vld [vmem:[%s1 + $0x3c] sm:$0xf]
  %v39 = vld [vmem:[%s1 + $0x40] sm:$0xf]
  %v40 = vld [vmem:[%s1 + $0x44] sm:$0xf]
  %v41 = vld [vmem:[%s1 + $0x48] sm:$0xf]
  %v42 = vld [vmem:[%s1 + $0x4c] sm:$0xf]
  %v43 = vld [vmem:[%s1 + $0x50] sm:$0xf]
  %v44 = vld [vmem:[%s1 + $0x54] sm:$0xf]
  %v45 = vld [vmem:[%s1 + $0x58] sm:$0xf]
  %v46 = vld [vmem:[%s1 + $0x5c] sm:$0xf]
  %v47 = vld [vmem:[%s1 + $0x60] sm:$0xf]
  %v48 = vld [vmem:[%s1 + $0x64] sm:$0xf]
  %v49 = vld [vmem:[%s1 + $0x68] sm:$0xf]
  %v50 = vld [vmem:[%s1 + $0x6c] sm:$0xf]
  %v51 = vld [vmem:[%s1 + $0x70] sm:$0xf]
  %v52 = vld [vmem:[%s1 + $0x74] sm:$0xf]
  %v53 = vld [vmem:[%s1 + $0x78] sm:$0xf]
  %v54 = vld [vmem:[%s1 + $0x7c] sm:$0xf]
  %v55 = vld [vmem:[%s1 + $0x80] sm:$0xf]
  %v56 = vld [vmem:[%s1 + $0x84] sm:$0xf]
  %v57 = vld [vmem:[%s1 + $0x88] sm:$0xf]
  %v58 = vld [vmem:[%s1 + $0x8c] sm:$0xf]
  %v59 = vld [vmem:[%s1 + $0x90] sm:$0xf]
  %v60 = vld [vmem:[%s1 + $0x94] sm:$0xf]
  %v61 = vld [vmem:[%s1 + $0x98] sm:$0xf]
  %v62 = vld [vmem:[%s1 + $0x9c] sm:$0xf]
  %v63 = vld [vmem:[%s1 + $0xa0] sm:$0xf]
  %v64 = vld [vmem:[%s1 + $0xa4] sm:$0xf]
  %v65 = vld [vmem:[%s1 + $0xa8] sm:$0xf]
  %v66 = vld [vmem:[%s1 + $0xac] sm:$0xf]
  %v67 = vld [vmem:[%s1 + $0xb0] sm:$0xf]
  %v68 = vld [vmem:[%s1 + $0xb4] sm:$0xf]
  %v69 = vld [vmem:[%s1 + $0xb8] sm:$0xf]
  %v70 = vld [vmem:[%s1 + $0xbc] sm:$0xf]
  %v71 = vld [vmem:[%s1 + $0xc0] sm:$0xf]
  %v72 = vld [vmem:[%s1 + $0xc4] sm:$0xf]
  %v73 = vld [vmem:[%s1 + $0xc8] sm:$0xf]
  %v74 = vld [vmem:[%s1 + $0xcc] sm:$0xf]
  %v75 = vld [vmem:[%s1 + $0xd0] sm:$0xf]
  %v76 = vld [vmem:[%s1 + $0xd4] sm:$0xf]
  %v77 = vld [vmem:[%s1 + $0xd8] sm:$0xf]
  %v78 = vld [vmem:[%s1 + $0xdc] sm:$0xf]
  %v79 = vld [vmem:[%s1 + $0xe0] sm:$0xf]
  %v80 = vld [vmem:[%s1 + $0xe4] sm:$0xf]
  %v81 = vld [vmem:[%s1 + $0xe8] sm:$0xf]
  %v82 = vld [vmem:[%s1 + $0xec] sm:$0xf]
  %v83 = vld [vmem:[%s1 + $0xf0] sm:$0xf]
  %v84 = vld [vmem:[%s1 + $0xf4] sm:$0xf]
  %v85 = vld [vmem:[%s1 + $0xf8] sm:$0xf]
  %v86 = vld [vmem:[%s1 + $0xfc] sm:$0xf]
  %v87 = vld [vmem:[%s2] sm:$0x1]
  %v89 = vlaneseq
  %v90 = vshrl.u32 %v89, 7
  %v91 = vsub.s32 0, %v90
  %v92 = vrot.slane %v87, %v91
  %v102 = vunpack.c.l.b16 %v15
  %v103 = vunpack.c.h.b16 %v15
  %v104 = vunpack.c.l.b16 %v16
  %v105 = vunpack.c.h.b16 %v16
  %v106 = vunpack.c.l.b16 %v17
  %v107 = vunpack.c.h.b16 %v17
  %v108 = vunpack.c.l.b16 %v18
  %v109 = vunpack.c.h.b16 %v18
  %v110 = vunpack.c.l.b16 %v19
  %v111 = vunpack.c.h.b16 %v19
  %v112 = vunpack.c.l.b16 %v20
  %v113 = vunpack.c.h.b16 %v20
  %v114 = vunpack.c.l.b16 %v21
  %v115 = vunpack.c.h.b16 %v21
  %v116 = vunpack.c.l.b16 %v22
  %v117 = vunpack.c.h.b16 %v22
  %v118 = vpack.c.b16 %v106, %v102
  %v119 = vpack.c.b16 %v107, %v103
  %v120 = vpack.c.b16 %v108, %v104
  %v121 = vpack.c.b16 %v109, %v105
  %v122 = vpack.c.b16 %v114, %v110
  %v123 = vpack.c.b16 %v115, %v111
  %v124 = vpack.c.b16 %v116, %v112
  %v125 = vpack.c.b16 %v117, %v113
  %v198 = vunpack.c.l.b16 %v23
  %v199 = vunpack.c.l.b16 %v24
  %v200 = vunpack.c.l.b16 %v25
  %v201 = vunpack.c.l.b16 %v26
  %v202 = vunpack.c.l.b16 %v27
  %v203 = vunpack.c.l.b16 %v28
  %v204 = vunpack.c.l.b16 %v29
  %v205 = vunpack.c.l.b16 %v30
  %v206 = vunpack.c.l.b16 %v31
  %v207 = vunpack.c.l.b16 %v32
  %v208 = vunpack.c.l.b16 %v33
  %v209 = vunpack.c.l.b16 %v34
  %v210 = vunpack.c.l.b16 %v35
  %v211 = vunpack.c.l.b16 %v36
  %v212 = vunpack.c.l.b16 %v37
  %v213 = vunpack.c.l.b16 %v38
  %v214 = vunpack.c.l.b16 %v39
  %v215 = vunpack.c.l.b16 %v40
  %v216 = vunpack.c.l.b16 %v41
  %v217 = vunpack.c.l.b16 %v42
  %v218 = vunpack.c.l.b16 %v43
  %v219 = vunpack.c.l.b16 %v44
  %v220 = vunpack.c.l.b16 %v45
  %v221 = vunpack.c.l.b16 %v46
  %v222 = vunpack.c.l.b16 %v47
  %v223 = vunpack.c.l.b16 %v48
  %v224 = vunpack.c.l.b16 %v49
  %v225 = vunpack.c.l.b16 %v50
  %v226 = vunpack.c.l.b16 %v51
  %v227 = vunpack.c.l.b16 %v52
  %v228 = vunpack.c.l.b16 %v53
  %v229 = vunpack.c.l.b16 %v54
  %v230 = vunpack.c.l.b16 %v55
  %v231 = vunpack.c.l.b16 %v56
  %v232 = vunpack.c.l.b16 %v57
  %v233 = vunpack.c.l.b16 %v58
  %v234 = vunpack.c.l.b16 %v59
  %v235 = vunpack.c.l.b16 %v60
  %v236 = vunpack.c.l.b16 %v61
  %v237 = vunpack.c.l.b16 %v62
  %v238 = vunpack.c.l.b16 %v63
  %v239 = vunpack.c.l.b16 %v64
  %v240 = vunpack.c.l.b16 %v65
  %v241 = vunpack.c.l.b16 %v66
  %v242 = vunpack.c.l.b16 %v67
  %v243 = vunpack.c.l.b16 %v68
  %v244 = vunpack.c.l.b16 %v69
  %v245 = vunpack.c.l.b16 %v70
  %v246 = vunpack.c.l.b16 %v71
  %v247 = vunpack.c.l.b16 %v72
  %v248 = vunpack.c.l.b16 %v73
  %v249 = vunpack.c.l.b16 %v74
  %v250 = vunpack.c.l.b16 %v75
  %v251 = vunpack.c.l.b16 %v76
  %v252 = vunpack.c.l.b16 %v77
  %v253 = vunpack.c.l.b16 %v78
  %v254 = vunpack.c.l.b16 %v79
  %v255 = vunpack.c.l.b16 %v80
  %v256 = vunpack.c.l.b16 %v81
  %v257 = vunpack.c.l.b16 %v82
  %v258 = vunpack.c.l.b16 %v83
  %v259 = vunpack.c.l.b16 %v84
  %v260 = vunpack.c.l.b16 %v85
  %v261 = vunpack.c.l.b16 %v86
  %v262 = vpack.c.b16 %v199, %v198
  %v263 = vpack.c.b16 %v201, %v200
  %v264 = vpack.c.b16 %v203, %v202
  %v265 = vpack.c.b16 %v205, %v204
  %v266 = vpack.c.b16 %v207, %v206
  %v267 = vpack.c.b16 %v209, %v208
  %v268 = vpack.c.b16 %v211, %v210
  %v269 = vpack.c.b16 %v213, %v212
  %v270 = vpack.c.b16 %v215, %v214
  %v271 = vpack.c.b16 %v217, %v216
  %v272 = vpack.c.b16 %v219, %v218
  %v273 = vpack.c.b16 %v221, %v220
  %v274 = vpack.c.b16 %v223, %v222
  %v275 = vpack.c.b16 %v225, %v224
  %v276 = vpack.c.b16 %v227, %v226
  %v277 = vpack.c.b16 %v229, %v228
  %v278 = vpack.c.b16 %v231, %v230
  %v279 = vpack.c.b16 %v233, %v232
  %v280 = vpack.c.b16 %v235, %v234
  %v281 = vpack.c.b16 %v237, %v236
  %v282 = vpack.c.b16 %v239, %v238
  %v283 = vpack.c.b16 %v241, %v240
  %v284 = vpack.c.b16 %v243, %v242
  %v285 = vpack.c.b16 %v245, %v244
  %v286 = vpack.c.b16 %v247, %v246
  %v287 = vpack.c.b16 %v249, %v248
  %v288 = vpack.c.b16 %v251, %v250
  %v289 = vpack.c.b16 %v253, %v252
  %v290 = vpack.c.b16 %v255, %v254
  %v291 = vpack.c.b16 %v257, %v256
  %v292 = vpack.c.b16 %v259, %v258
  %v293 = vpack.c.b16 %v261, %v260
  %326 = vmatprep.subr.bf16.mxu0 0
  %327 = vmatpush1.bf16.msra.mxu0 %v262
  %328 = vmatprep.subr.bf16.mxu0 0
  %329 = vmatpush1.bf16.msra.mxu0 %v263
  %330 = vmatprep.subr.bf16.mxu0 0
  %331 = vmatpush1.bf16.msra.mxu0 %v264
  %332 = vmatprep.subr.bf16.mxu0 0
  %333 = vmatpush1.bf16.msra.mxu0 %v265
  %334 = vmatprep.subr.bf16.mxu0 0
  %335 = vmatpush1.bf16.msra.mxu0 %v266
  %336 = vmatprep.subr.bf16.mxu0 0
  %337 = vmatpush1.bf16.msra.mxu0 %v267
  %338 = vmatprep.subr.bf16.mxu0 0
  %339 = vmatpush1.bf16.msra.mxu0 %v268
  %340 = vmatprep.subr.bf16.mxu0 0
  %341 = vmatpush1.bf16.msra.mxu0 %v269
  %342 = vmatprep.subr.bf16.mxu0 0
  %343 = vmatpush1.bf16.msra.mxu0 %v270
  %344 = vmatprep.subr.bf16.mxu0 0
  %345 = vmatpush1.bf16.msra.mxu0 %v271
  %346 = vmatprep.subr.bf16.mxu0 0
  %347 = vmatpush1.bf16.msra.mxu0 %v272
  %348 = vmatprep.subr.bf16.mxu0 0
  %349 = vmatpush1.bf16.msra.mxu0 %v273
  %350 = vmatprep.subr.bf16.mxu0 0
  %351 = vmatpush1.bf16.msra.mxu0 %v274
  %352 = vmatprep.subr.bf16.mxu0 0
  %353 = vmatpush1.bf16.msra.mxu0 %v275
  %354 = vmatprep.subr.bf16.mxu0 0
  %355 = vmatpush1.bf16.msra.mxu0 %v276
  %356 = vmatprep.subr.bf16.mxu0 0
  %357 = vmatpush1.bf16.msra.mxu0 %v277
  %358 = vmatprep.mubr.bf16.mxu0 %v119
  %359 = vmatmul.mubr.bf16.gmra.mrb[0].mxu0 %v118
  %v360 = vpop.f32.mrb[0].mxu0
  %v361 = vadd.f32 %v92, %v360
  %v362 = vpop.f32.mrb[0].mxu0
  %v363 = vpop.f32.mrb[0].mxu0
  %v364 = vadd.f32 %v92, %v363
  %v365 = vpop.f32.mrb[0].mxu0
  %366 = vmatprep.mubr.bf16.mxu0 %v123
  %367 = vmatmul.mubr.bf16.gmra.mrb[0].mxu0 %v122
  %v368 = vpop.f32.mrb[0].mxu0
  %v369 = vadd.f32 %v92, %v368
  %v370 = vpop.f32.mrb[0].mxu0
  %v371 = vpop.f32.mrb[0].mxu0
  %v372 = vadd.f32 %v92, %v371
  %v373 = vpop.f32.mrb[0].mxu0
  %374 = vdwg.mxu0
  %375 = vmatprep.subr.bf16.mxu0 0
  %376 = vmatpush1.bf16.msra.mxu0 %v278
  %377 = vmatprep.subr.bf16.mxu0 0
  %378 = vmatpush1.bf16.msra.mxu0 %v279
  %379 = vmatprep.subr.bf16.mxu0 0
  %380 = vmatpush1.bf16.msra.mxu0 %v280
  %381 = vmatprep.subr.bf16.mxu0 0
  %382 = vmatpush1.bf16.msra.mxu0 %v281
  %383 = vmatprep.subr.bf16.mxu0 0
  %384 = vmatpush1.bf16.msra.mxu0 %v282
  %385 = vmatprep.subr.bf16.mxu0 0
  %386 = vmatpush1.bf16.msra.mxu0 %v283
  %387 = vmatprep.subr.bf16.mxu0 0
  %388 = vmatpush1.bf16.msra.mxu0 %v284
  %389 = vmatprep.subr.bf16.mxu0 0
  %390 = vmatpush1.bf16.msra.mxu0 %v285
  %391 = vmatprep.subr.bf16.mxu0 0
  %392 = vmatpush1.bf16.msra.mxu0 %v286
  %393 = vmatprep.subr.bf16.mxu0 0
  %394 = vmatpush1.bf16.msra.mxu0 %v287
  %395 = vmatprep.subr.bf16.mxu0 0
  %396 = vmatpush1.bf16.msra.mxu0 %v288
  %397 = vmatprep.subr.bf16.mxu0 0
  %398 = vmatpush1.bf16.msra.mxu0 %v289
  %399 = vmatprep.subr.bf16.mxu0 0
  %400 = vmatpush1.bf16.msra.mxu0 %v290
  %401 = vmatprep.subr.bf16.mxu0 0
  %402 = vmatpush1.bf16.msra.mxu0 %v291
  %403 = vmatprep.subr.bf16.mxu0 0
  %404 = vmatpush1.bf16.msra.mxu0 %v292
  %405 = vmatprep.subr.bf16.mxu0 0
  %406 = vmatpush1.bf16.msra.mxu0 %v293
  %407 = vmatprep.mubr.bf16.mxu0 %v121
  %408 = vmatmul.mubr.bf16.gmra.mrb[0].mxu0 %v120
  %v409 = vpop.f32.mrb[0].mxu0
  %v410 = vadd.f32 %v361, %v409
  %v411 = vpop.f32.mrb[0].mxu0
  %v412 = vpop.f32.mrb[0].mxu0
  %v413 = vadd.f32 %v364, %v412
  %v414 = vpop.f32.mrb[0].mxu0
  %415 = vmatprep.mubr.bf16.mxu0 %v125
  %416 = vmatmul.mubr.bf16.gmra.mrb[0].mxu0 %v124
  %v417 = vpop.f32.mrb[0].mxu0
  %v418 = vadd.f32 %v369, %v417
  %v419 = vpop.f32.mrb[0].mxu0
  %v420 = vpop.f32.mrb[0].mxu0
  %v421 = vadd.f32 %v372, %v420
  %v422 = vpop.f32.mrb[0].mxu0
  %423 = vdwg.mxu0
  %v424 = vmax.f32 %v410, 0.0
  %v425 = vmax.f32 %v413, 0.0
  %v426 = vmax.f32 %v418, 0.0
  %v427 = vmax.f32 %v421, 0.0
  %v428 = vpack.c.bf16 %v425, %v424
  %v429 = vpack.c.bf16 %v427, %v426
  %v432 = vunpack.c.l.b16 %v428
  %v433 = vunpack.c.h.b16 %v428
  %v434 = vunpack.c.l.b16 %v429
  %v435 = vunpack.c.h.b16 %v429
  %v436 = vpack.c.b16 %v432, %v432
  %v437 = vpack.c.b16 %v433, %v433
  %v438 = vpack.c.b16 %v434, %v434
  %v439 = vpack.c.b16 %v435, %v435
  %444 = vst [vmem:[%s3] sm:$0xf] %v436
  %445 = vst [vmem:[%s3 + $0x4] sm:$0xf] %v437
  %446 = vst [vmem:[%s3 + $0x8] sm:$0xf] %v438
  %447 = vst [vmem:[%s3 + $0xc] sm:$0xf] %v439
  // Predicated region
  $region14: #{dueling_dqn_forward.5} parent=0 // pred_check
    _
  $region15: #{dueling_dqn_forward.5} parent=0 // pred_check_branch
    %449 = sbr.rel (0) target = $region17
  $region16: #{dueling_dqn_forward.5} parent=0 // pred_region
    _
  $region17: #{dueling_dqn_forward.5} parent=0 // pred_fallthru
    _
  // Predicated region
  $region18: #{dueling_dqn_forward.5} parent=0 // pred_check
    _
  $region19: #{dueling_dqn_forward.5} parent=0 // pred_check_branch
    %451 = sbr.rel (0) target = $region21
  $region20: #{dueling_dqn_forward.5} parent=0 // pred_region
    _
  $region21: #{dueling_dqn_forward.5} parent=0 // pred_fallthru
    _

// kernel: dueling_dqn_forward.6
$region0: #{dueling_dqn_forward.6}
  #allocation0 [shape = 'u32[]', space=smem, size = 0x4, offset = 0x4, fixed_abs, tag = 'smem constant byte address 0x4 - core index']
  #allocation1 [shape = 'u32[144,128]{1,0:T(1,128)}', space=vmem, size = 0x12000, scoped, tag = 'internal scratch']
  %s0 = inlined_call_operand.vmem [shape: bf16[16,576], index: 0, kind: input, shape index: {}]
  %s1 = inlined_call_operand.vmem [shape: bf16[576,128], index: 1, kind: input, shape index: {}]
  %s2 = inlined_call_operand.vmem [shape: f32[1,128], index: 2, kind: input, shape index: {}]
  %s3 = inlined_call_operand.vmem [shape: bf16[16,128], index: 3, kind: output, shape index: {}]
  %s4 = sld [smem:[#allocation0]]
  $region22: #{dueling_dqn_forward.6} parent=0
    _
  %s6 = ssub.s32 1, %s4
  %s7 = scalar_select 0, %s6, %s4
  // Predicated region
  $region2: #{dueling_dqn_forward.6} parent=0 // pred_check
    _
  $region3: #{dueling_dqn_forward.6} parent=0 // pred_check_branch
    %9 = sbr.rel (0) target = $region5
  $region4: #{dueling_dqn_forward.6} parent=0 // pred_region
    _
  $region5: #{dueling_dqn_forward.6} parent=0 // pred_fallthru
    _
  // Predicated region
  $region6: #{dueling_dqn_forward.6} parent=0 // pred_check
    _
  $region7: #{dueling_dqn_forward.6} parent=0 // pred_check_branch
    %11 = sbr.rel (0) target = $region9
  $region8: #{dueling_dqn_forward.6} parent=0 // pred_region
    _
  $region9: #{dueling_dqn_forward.6} parent=0 // pred_fallthru
    _
  // Predicated region
  $region10: #{dueling_dqn_forward.6} parent=0 // pred_check
    _
  $region11: #{dueling_dqn_forward.6} parent=0 // pred_check_branch
    %13 = sbr.rel (0) target = $region13
  $region12: #{dueling_dqn_forward.6} parent=0 // pred_region
    _
  $region13: #{dueling_dqn_forward.6} parent=0 // pred_fallthru
    _
  %v15 = vld [vmem:[%s0] sm:$0xff]
  %v16 = vld [vmem:[%s0 + $0x8] sm:$0xff]
  %v17 = vld [vmem:[%s0 + $0x10] sm:$0xf]
  %v18 = vld [vmem:[%s0 + $0x14] sm:$0xff]
  %v19 = vld [vmem:[%s0 + $0x1c] sm:$0xff]
  %v20 = vld [vmem:[%s0 + $0x24] sm:$0xf]
  %v21 = vld [vmem:[%s1] sm:$0xf]
  %v22 = vld [vmem:[%s1 + $0x4] sm:$0xf]
  %v23 = vld [vmem:[%s1 + $0x8] sm:$0xf]
  %v24 = vld [vmem:[%s1 + $0xc] sm:$0xf]
  %v25 = vld [vmem:[%s1 + $0x10] sm:$0xf]
  %v26 = vld [vmem:[%s1 + $0x14] sm:$0xf]
  %v27 = vld [vmem:[%s1 + $0x18] sm:$0xf]
  %v28 = vld [vmem:[%s1 + $0x1c] sm:$0xf]
  %v29 = vld [vmem:[%s1 + $0x20] sm:$0xf]
  %v30 = vld [vmem:[%s1 + $0x24] sm:$0xf]
  %v31 = vld [vmem:[%s1 + $0x28] sm:$0xf]
  %v32 = vld [vmem:[%s1 + $0x2c] sm:$0xf]
  %v33 = vld [vmem:[%s1 + $0x30] sm:$0xf]
  %v34 = vld [vmem:[%s1 + $0x34] sm:$0xf]
  %v35 = vld [vmem:[%s1 + $0x38] sm:$0xf]
  %v36 = vld [vmem:[%s1 + $0x3c] sm:$0xf]
  %v37 = vld [vmem:[%s1 + $0x40] sm:$0xf]
  %v38 = vld [vmem:[%s1 + $0x44] sm:$0xf]
  %v39 = vld [vmem:[%s1 + $0x48] sm:$0xf]
  %v40 = vld [vmem:[%s1 + $0x4c] sm:$0xf]
  %v41 = vld [vmem:[%s1 + $0x50] sm:$0xf]
  %v42 = vld [vmem:[%s1 + $0x54] sm:$0xf]
  %v43 = vld [vmem:[%s1 + $0x58] sm:$0xf]
  %v44 = vld [vmem:[%s1 + $0x5c] sm:$0xf]
  %v45 = vld [vmem:[%s1 + $0x60] sm:$0xf]
  %v46 = vld [vmem:[%s1 + $0x64] sm:$0xf]
  %v47 = vld [vmem:[%s1 + $0x68] sm:$0xf]
  %v48 = vld [vmem:[%s1 + $0x6c] sm:$0xf]
  %v49 = vld [vmem:[%s1 + $0x70] sm:$0xf]
  %v50 = vld [vmem:[%s1 + $0x74] sm:$0xf]
  %v51 = vld [vmem:[%s1 + $0x78] sm:$0xf]
  %v52 = vld [vmem:[%s1 + $0x7c] sm:$0xf]
  %v53 = vld [vmem:[%s1 + $0x80] sm:$0xf]
  %v54 = vld [vmem:[%s1 + $0x84] sm:$0xf]
  %v55 = vld [vmem:[%s1 + $0x88] sm:$0xf]
  %v56 = vld [vmem:[%s1 + $0x8c] sm:$0xf]
  %v57 = vld [vmem:[%s1 + $0x90] sm:$0xf]
  %v58 = vld [vmem:[%s1 + $0x94] sm:$0xf]
  %v59 = vld [vmem:[%s1 + $0x98] sm:$0xf]
  %v60 = vld [vmem:[%s1 + $0x9c] sm:$0xf]
  %v61 = vld [vmem:[%s1 + $0xa0] sm:$0xf]
  %v62 = vld [vmem:[%s1 + $0xa4] sm:$0xf]
  %v63 = vld [vmem:[%s1 + $0xa8] sm:$0xf]
  %v64 = vld [vmem:[%s1 + $0xac] sm:$0xf]
  %v65 = vld [vmem:[%s1 + $0xb0] sm:$0xf]
  %v66 = vld [vmem:[%s1 + $0xb4] sm:$0xf]
  %v67 = vld [vmem:[%s1 + $0xb8] sm:$0xf]
  %v68 = vld [vmem:[%s1 + $0xbc] sm:$0xf]
  %v69 = vld [vmem:[%s1 + $0xc0] sm:$0xf]
  %v70 = vld [vmem:[%s1 + $0xc4] sm:$0xf]
  %v71 = vld [vmem:[%s1 + $0xc8] sm:$0xf]
  %v72 = vld [vmem:[%s1 + $0xcc] sm:$0xf]
  %v73 = vld [vmem:[%s1 + $0xd0] sm:$0xf]
  %v74 = vld [vmem:[%s1 + $0xd4] sm:$0xf]
  %v75 = vld [vmem:[%s1 + $0xd8] sm:$0xf]
  %v76 = vld [vmem:[%s1 + $0xdc] sm:$0xf]
  %v77 = vld [vmem:[%s1 + $0xe0] sm:$0xf]
  %v78 = vld [vmem:[%s1 + $0xe4] sm:$0xf]
  %v79 = vld [vmem:[%s1 + $0xe8] sm:$0xf]
  %v80 = vld [vmem:[%s1 + $0xec] sm:$0xf]
  %v81 = vld [vmem:[%s1 + $0xf0] sm:$0xf]
  %v82 = vld [vmem:[%s1 + $0xf4] sm:$0xf]
  %v83 = vld [vmem:[%s1 + $0xf8] sm:$0xf]
  %v84 = vld [vmem:[%s1 + $0xfc] sm:$0xf]
  %v85 = vld [vmem:[%s1 + $0x100] sm:$0xf]
  %v86 = vld [vmem:[%s1 + $0x104] sm:$0xf]
  %v87 = vld [vmem:[%s1 + $0x108] sm:$0xf]
  %v88 = vld [vmem:[%s1 + $0x10c] sm:$0xf]
  %v89 = vld [vmem:[%s1 + $0x110] sm:$0xf]
  %v90 = vld [vmem:[%s1 + $0x114] sm:$0xf]
  %v91 = vld [vmem:[%s1 + $0x118] sm:$0xf]
  %v92 = vld [vmem:[%s1 + $0x11c] sm:$0xf]
  %v93 = vld [vmem:[%s2] sm:$0x1]
  %v95 = vlaneseq
  %v96 = vshrl.u32 %v95, 7
  %v97 = vsub.s32 0, %v96
  %v98 = vrot.slane %v93, %v97
  %v106 = vunpack.c.l.b16 %v15
  %v107 = vunpack.c.h.b16 %v15
  %v108 = vunpack.c.l.b16 %v16
  %v109 = vunpack.c.h.b16 %v16
  %v110 = vunpack.c.l.b16 %v17
  %v111 = vunpack.c.l.b16 %v18
  %v112 = vunpack.c.h.b16 %v18
  %v113 = vunpack.c.l.b16 %v19
  %v114 = vunpack.c.h.b16 %v19
  %v115 = vunpack.c.l.b16 %v20
  %v116 = vpack.c.b16 %v111, %v106
  %v117 = vpack.c.b16 %v112, %v107
  %v118 = vpack.c.b16 %v113, %v108
  %v119 = vpack.c.b16 %v114, %v109
  %v120 = vpack.c.b16 %v115, %v110
  %v197 = vunpack.c.l.b16 %v21
  %v198 = vunpack.c.l.b16 %v22
  %v199 = vunpack.c.l.b16 %v23
  %v200 = vunpack.c.l.b16 %v24
  %v201 = vunpack.c.l.b16 %v25
  %v202 = vunpack.c.l.b16 %v26
  %v203 = vunpack.c.l.b16 %v27
  %v204 = vunpack.c.l.b16 %v28
  %v205 = vunpack.c.l.b16 %v29
  %v206 = vunpack.c.l.b16 %v30
  %v207 = vunpack.c.l.b16 %v31
  %v208 = vunpack.c.l.b16 %v32
  %v209 = vunpack.c.l.b16 %v33
  %v210 = vunpack.c.l.b16 %v34
  %v211 = vunpack.c.l.b16 %v35
  %v212 = vunpack.c.l.b16 %v36
  %v213 = vunpack.c.l.b16 %v37
  %v214 = vunpack.c.l.b16 %v38
  %v215 = vunpack.c.l.b16 %v39
  %v216 = vunpack.c.l.b16 %v40
  %v217 = vunpack.c.l.b16 %v41
  %v218 = vunpack.c.l.b16 %v42
  %v219 = vunpack.c.l.b16 %v43
  %v220 = vunpack.c.l.b16 %v44
  %v221 = vunpack.c.l.b16 %v45
  %v222 = vunpack.c.l.b16 %v46
  %v223 = vunpack.c.l.b16 %v47
  %v224 = vunpack.c.l.b16 %v48
  %v225 = vunpack.c.l.b16 %v49
  %v226 = vunpack.c.l.b16 %v50
  %v227 = vunpack.c.l.b16 %v51
  %v228 = vunpack.c.l.b16 %v52
  %v229 = vunpack.c.l.b16 %v53
  %v230 = vunpack.c.l.b16 %v54
  %v231 = vunpack.c.l.b16 %v55
  %v232 = vunpack.c.l.b16 %v56
  %v233 = vunpack.c.l.b16 %v57
  %v234 = vunpack.c.l.b16 %v58
  %v235 = vunpack.c.l.b16 %v59
  %v236 = vunpack.c.l.b16 %v60
  %v237 = vunpack.c.l.b16 %v61
  %v238 = vunpack.c.l.b16 %v62
  %v239 = vunpack.c.l.b16 %v63
  %v240 = vunpack.c.l.b16 %v64
  %v241 = vunpack.c.l.b16 %v65
  %v242 = vunpack.c.l.b16 %v66
  %v243 = vunpack.c.l.b16 %v67
  %v244 = vunpack.c.l.b16 %v68
  %v245 = vunpack.c.l.b16 %v69
  %v246 = vunpack.c.l.b16 %v70
  %v247 = vunpack.c.l.b16 %v71
  %v248 = vunpack.c.l.b16 %v72
  %v249 = vunpack.c.l.b16 %v73
  %v250 = vunpack.c.l.b16 %v74
  %v251 = vunpack.c.l.b16 %v75
  %v252 = vunpack.c.l.b16 %v76
  %v253 = vunpack.c.l.b16 %v77
  %v254 = vunpack.c.l.b16 %v78
  %v255 = vunpack.c.l.b16 %v79
  %v256 = vunpack.c.l.b16 %v80
  %v257 = vunpack.c.l.b16 %v81
  %v258 = vunpack.c.l.b16 %v82
  %v259 = vunpack.c.l.b16 %v83
  %v260 = vunpack.c.l.b16 %v84
  %v261 = vunpack.c.l.b16 %v85
  %v262 = vunpack.c.l.b16 %v86
  %v263 = vunpack.c.l.b16 %v87
  %v264 = vunpack.c.l.b16 %v88
  %v265 = vunpack.c.l.b16 %v89
  %v266 = vunpack.c.l.b16 %v90
  %v267 = vunpack.c.l.b16 %v91
  %v268 = vunpack.c.l.b16 %v92
  %v269 = vpack.c.b16 %v198, %v197
  %v270 = vpack.c.b16 %v200, %v199
  %v271 = vpack.c.b16 %v202, %v201
  %v272 = vpack.c.b16 %v204, %v203
  %v273 = vpack.c.b16 %v206, %v205
  %v274 = vpack.c.b16 %v208, %v207
  %v275 = vpack.c.b16 %v210, %v209
  %v276 = vpack.c.b16 %v212, %v211
  %v277 = vpack.c.b16 %v214, %v213
  %v278 = vpack.c.b16 %v216, %v215
  %v279 = vpack.c.b16 %v218, %v217
  %v280 = vpack.c.b16 %v220, %v219
  %v281 = vpack.c.b16 %v222, %v221
  %v282 = vpack.c.b16 %v224, %v223
  %v283 = vpack.c.b16 %v226, %v225
  %v284 = vpack.c.b16 %v228, %v227
  %v285 = vpack.c.b16 %v230, %v229
  %v286 = vpack.c.b16 %v232, %v231
  %v287 = vpack.c.b16 %v234, %v233
  %v288 = vpack.c.b16 %v236, %v235
  %v289 = vpack.c.b16 %v238, %v237
  %v290 = vpack.c.b16 %v240, %v239
  %v291 = vpack.c.b16 %v242, %v241
  %v292 = vpack.c.b16 %v244, %v243
  %v293 = vpack.c.b16 %v246, %v245
  %v294 = vpack.c.b16 %v248, %v247
  %v295 = vpack.c.b16 %v250, %v249
  %v296 = vpack.c.b16 %v252, %v251
  %v297 = vpack.c.b16 %v254, %v253
  %v298 = vpack.c.b16 %v256, %v255
  %v299 = vpack.c.b16 %v258, %v257
  %v300 = vpack.c.b16 %v260, %v259
  %v301 = vpack.c.b16 %v262, %v261
  %v302 = vpack.c.b16 %v264, %v263
  %v303 = vpack.c.b16 %v266, %v265
  %v304 = vpack.c.b16 %v268, %v267
  %vm341 = vcmask 523264
  %v343 = vsel %vm341, %v120, 0
  %345 = vmatprep.subr.bf16.mxu0 0
  %346 = vmatpush1.bf16.msra.mxu0 %v269
  %347 = vmatprep.subr.bf16.mxu0 0
  %348 = vmatpush1.bf16.msra.mxu0 %v270
  %349 = vmatprep.subr.bf16.mxu0 0
  %350 = vmatpush1.bf16.msra.mxu0 %v271
  %351 = vmatprep.subr.bf16.mxu0 0
  %352 = vmatpush1.bf16.msra.mxu0 %v272
  %353 = vmatprep.subr.bf16.mxu0 0
  %354 = vmatpush1.bf16.msra.mxu0 %v273
  %355 = vmatprep.subr.bf16.mxu0 0
  %356 = vmatpush1.bf16.msra.mxu0 %v274
  %357 = vmatprep.subr.bf16.mxu0 0
  %358 = vmatpush1.bf16.msra.mxu0 %v275
  %359 = vmatprep.subr.bf16.mxu0 0
  %360 = vmatpush1.bf16.msra.mxu0 %v276
  %361 = vmatprep.subr.bf16.mxu0 0
  %362 = vmatpush1.bf16.msra.mxu0 %v277
  %363 = vmatprep.subr.bf16.mxu0 0
  %364 = vmatpush1.bf16.msra.mxu0 %v278
  %365 = vmatprep.subr.bf16.mxu0 0
  %366 = vmatpush1.bf16.msra.mxu0 %v279
  %367 = vmatprep.subr.bf16.mxu0 0
  %368 = vmatpush1.bf16.msra.mxu0 %v280
  %369 = vmatprep.subr.bf16.mxu0 0
  %370 = vmatpush1.bf16.msra.mxu0 %v281
  %371 = vmatprep.subr.bf16.mxu0 0
  %372 = vmatpush1.bf16.msra.mxu0 %v282
  %373 = vmatprep.subr.bf16.mxu0 0
  %374 = vmatpush1.bf16.msra.mxu0 %v283
  %375 = vmatprep.subr.bf16.mxu0 0
  %376 = vmatpush1.bf16.msra.mxu0 %v284
  %377 = vmatprep.mubr.bf16.mxu0 %v117
  %378 = vmatmul.mubr.bf16.gmra.mrb[0].mxu0 %v116
  %v379 = vpop.f32.mrb[0].mxu0
  %v380 = vadd.f32 %v98, %v379
  %v381 = vpop.f32.mrb[0].mxu0
  %v382 = vpop.f32.mrb[0].mxu0
  %v383 = vadd.f32 %v98, %v382
  %v384 = vpop.f32.mrb[0].mxu0
  %385 = vdwg.mxu0
  %386 = vmatprep.subr.bf16.mxu0 0
  %387 = vmatpush1.bf16.msra.mxu0 %v285
  %388 = vmatprep.subr.bf16.mxu0 0
  %389 = vmatpush1.bf16.msra.mxu0 %v286
  %390 = vmatprep.subr.bf16.mxu0 0
  %391 = vmatpush1.bf16.msra.mxu0 %v287
  %392 = vmatprep.subr.bf16.mxu0 0
  %393 = vmatpush1.bf16.msra.mxu0 %v288
  %394 = vmatprep.subr.bf16.mxu0 0
  %395 = vmatpush1.bf16.msra.mxu0 %v289
  %396 = vmatprep.subr.bf16.mxu0 0
  %397 = vmatpush1.bf16.msra.mxu0 %v290
  %398 = vmatprep.subr.bf16.mxu0 0
  %399 = vmatpush1.bf16.msra.mxu0 %v291
  %400 = vmatprep.subr.bf16.mxu0 0
  %401 = vmatpush1.bf16.msra.mxu0 %v292
  %402 = vmatprep.subr.bf16.mxu0 0
  %403 = vmatpush1.bf16.msra.mxu0 %v293
  %404 = vmatprep.subr.bf16.mxu0 0
  %405 = vmatpush1.bf16.msra.mxu0 %v294
  %406 = vmatprep.subr.bf16.mxu0 0
  %407 = vmatpush1.bf16.msra.mxu0 %v295
  %408 = vmatprep.subr.bf16.mxu0 0
  %409 = vmatpush1.bf16.msra.mxu0 %v296
  %410 = vmatprep.subr.bf16.mxu0 0
  %411 = vmatpush1.bf16.msra.mxu0 %v297
  %412 = vmatprep.subr.bf16.mxu0 0
  %413 = vmatpush1.bf16.msra.mxu0 %v298
  %414 = vmatprep.subr.bf16.mxu0 0
  %415 = vmatpush1.bf16.msra.mxu0 %v299
  %416 = vmatprep.subr.bf16.mxu0 0
  %417 = vmatpush1.bf16.msra.mxu0 %v300
  %418 = vmatprep.mubr.bf16.mxu0 %v119
  %419 = vmatmul.mubr.bf16.gmra.mrb[0].mxu0 %v118
  %v420 = vpop.f32.mrb[0].mxu0
  %v421 = vadd.f32 %v380, %v420
  %v422 = vpop.f32.mrb[0].mxu0
  %v423 = vpop.f32.mrb[0].mxu0
  %v424 = vadd.f32 %v383, %v423
  %v425 = vpop.f32.mrb[0].mxu0
  %426 = vdwg.mxu0
  %427 = vmatprep.subr.bf16.mxu0 0
  %428 = vmatpush1.bf16.msra.mxu0 %v301
  %429 = vmatprep.subr.bf16.mxu0 0
  %430 = vmatpush1.bf16.msra.mxu0 %v302
  %431 = vmatprep.subr.bf16.mxu0 0
  %432 = vmatpush1.bf16.msra.mxu0 %v303
  %433 = vmatprep.subr.bf16.mxu0 0
  %434 = vmatpush1.bf16.msra.mxu0 %v304
  %435 = vmatprep.subr.bf16.mxu0 0
  %436 = vmatpush1.bf16.msra.mxu0 0
  %437 = vmatprep.subr.bf16.mxu0 0
  %438 = vmatpush1.bf16.msra.mxu0 0
  %439 = vmatprep.subr.bf16.mxu0 0
  %440 = vmatpush1.bf16.msra.mxu0 0
  %441 = vmatprep.subr.bf16.mxu0 0
  %442 = vmatpush1.bf16.msra.mxu0 0
  %443 = vmatprep.subr.bf16.mxu0 0
  %444 = vmatpush1.bf16.msra.mxu0 0
  %445 = vmatprep.subr.bf16.mxu0 0
  %446 = vmatpush1.bf16.msra.mxu0 0
  %447 = vmatprep.subr.bf16.mxu0 0
  %448 = vmatpush1.bf16.msra.mxu0 0
  %449 = vmatprep.subr.bf16.mxu0 0
  %450 = vmatpush1.bf16.msra.mxu0 0
  %451 = vmatprep.subr.bf16.mxu0 0
  %452 = vmatpush1.bf16.msra.mxu0 0
  %453 = vmatprep.subr.bf16.mxu0 0
  %454 = vmatpush1.bf16.msra.mxu0 0
  %455 = vmatprep.subr.bf16.mxu0 0
  %456 = vmatpush1.bf16.msra.mxu0 0
  %457 = vmatprep.subr.bf16.mxu0 0
  %458 = vmatpush1.bf16.msra.mxu0 0
  %459 = vmatprep.mubr.bf16.mxu0 0
  %460 = vmatmul.mubr.bf16.gmra.mrb[0].mxu0 %v343
  %v461 = vpop.f32.mrb[0].mxu0
  %v462 = vadd.f32 %v421, %v461
  %v463 = vpop.f32.mrb[0].mxu0
  %v464 = vpop.f32.mrb[0].mxu0
  %v465 = vadd.f32 %v424, %v464
  %v466 = vpop.f32.mrb[0].mxu0
  %467 = vdwg.mxu0
  %v468 = vmax.f32 %v462, 0.0
  %v469 = vmax.f32 %v465, 0.0
  %v470 = vpack.c.bf16 %v469, %v468
  %v472 = vunpack.c.l.b16 %v470
  %v473 = vunpack.c.h.b16 %v470
  %v474 = vpack.c.b16 %v472, %v472
  %v475 = vpack.c.b16 %v473, %v473
  %478 = vst [vmem:[%s3] sm:$0xf] %v474
  %479 = vst [vmem:[%s3 + $0x4] sm:$0xf] %v475
  // Predicated region
  $region14: #{dueling_dqn_forward.6} parent=0 // pred_check
    _
  $region15: #{dueling_dqn_forward.6} parent=0 // pred_check_branch
    %481 = sbr.rel (0) target = $region17
  $region16: #{dueling_dqn_forward.6} parent=0 // pred_region
    _
  $region17: #{dueling_dqn_forward.6} parent=0 // pred_fallthru
    _
  // Predicated region
  $region18: #{dueling_dqn_forward.6} parent=0 // pred_check
    _
  $region19: #{dueling_dqn_forward.6} parent=0 // pred_check_branch
    %483 = sbr.rel (0) target = $region21
  $region20: #{dueling_dqn_forward.6} parent=0 // pred_region
    _
  $region21: #{dueling_dqn_forward.6} parent=0 // pred_fallthru
    _

// kernel: dueling_dqn_forward.7
$region0: #{dueling_dqn_forward.7}
  #allocation0 [shape = 'u32[]', space=smem, size = 0x4, offset = 0x4, fixed_abs, tag = 'smem constant byte address 0x4 - core index']
  #allocation1 [shape = 'u32[144,128]{1,0:T(1,128)}', space=vmem, size = 0x12000, scoped, tag = 'internal scratch']
  %s0 = inlined_call_operand.vmem [shape: bf16[16,64], index: 0, kind: input, shape index: {}]
  %s1 = inlined_call_operand.vmem [shape: bf16[64,1024], index: 1, kind: input, shape index: {}]
  %s2 = inlined_call_operand.vmem [shape: f32[1,1024], index: 2, kind: input, shape index: {}]
  %s3 = inlined_call_operand.vmem [shape: bf16[1024,128], index: 3, kind: input, shape index: {}]
  %s4 = inlined_call_operand.vmem [shape: f32[1,128], index: 4, kind: input, shape index: {}]
  %s5 = inlined_call_operand.vmem [shape: f32[16,128], index: 5, kind: output, shape index: {}]
  %s6 = sld [smem:[#allocation0]]
  $region30: #{dueling_dqn_forward.7} parent=0
    _
  %s8 = ssub.s32 1, %s6
  %s9 = scalar_select 0, %s8, %s6
  // Predicated region
  $region2: #{dueling_dqn_forward.7} parent=0 // pred_check
    _
  $region3: #{dueling_dqn_forward.7} parent=0 // pred_check_branch
    %11 = sbr.rel (0) target = $region5
  $region4: #{dueling_dqn_forward.7} parent=0 // pred_region
    _
  $region5: #{dueling_dqn_forward.7} parent=0 // pred_fallthru
    _
  // Predicated region
  $region6: #{dueling_dqn_forward.7} parent=0 // pred_check
    _
  $region7: #{dueling_dqn_forward.7} parent=0 // pred_check_branch
    %13 = sbr.rel (0) target = $region9
  $region8: #{dueling_dqn_forward.7} parent=0 // pred_region
    _
  $region9: #{dueling_dqn_forward.7} parent=0 // pred_fallthru
    _
  // Predicated region
  $region10: #{dueling_dqn_forward.7} parent=0 // pred_check
    _
  $region11: #{dueling_dqn_forward.7} parent=0 // pred_check_branch
    %15 = sbr.rel (0) target = $region13
  $region12: #{dueling_dqn_forward.7} parent=0 // pred_region
    _
  $region13: #{dueling_dqn_forward.7} parent=0 // pred_fallthru
    _
  // Predicated region
  $region14: #{dueling_dqn_forward.7} parent=0 // pred_check
    _
  $region15: #{dueling_dqn_forward.7} parent=0 // pred_check_branch
    %17 = sbr.rel (0) target = $region17
  $region16: #{dueling_dqn_forward.7} parent=0 // pred_region
    _
  $region17: #{dueling_dqn_forward.7} parent=0 // pred_fallthru
    _
  // Predicated region
  $region18: #{dueling_dqn_forward.7} parent=0 // pred_check
    _
  $region19: #{dueling_dqn_forward.7} parent=0 // pred_check_branch
    %19 = sbr.rel (0) target = $region21
  $region20: #{dueling_dqn_forward.7} parent=0 // pred_region
    _
  $region21: #{dueling_dqn_forward.7} parent=0 // pred_fallthru
    _
  %v21 = vld [vmem:[%s0] sm:$0xf]
  %v22 = vld [vmem:[%s0 + $0x4] sm:$0xf]
  %v23 = vld [vmem:[%s1] sm:$0xff]
  %v24 = vld [vmem:[%s1 + $0x8] sm:$0xff]
  %v25 = vld [vmem:[%s1 + $0x10] sm:$0xff]
  %v26 = vld [vmem:[%s1 + $0x18] sm:$0xff]
  %v27 = vld [vmem:[%s1 + $0x20] sm:$0xff]
  %v28 = vld [vmem:[%s1 + $0x28] sm:$0xff]
  %v29 = vld [vmem:[%s1 + $0x30] sm:$0xff]
  %v30 = vld [vmem:[%s1 + $0x38] sm:$0xff]
  %v31 = vld [vmem:[%s1 + $0x40] sm:$0xff]
  %v32 = vld [vmem:[%s1 + $0x48] sm:$0xff]
  %v33 = vld [vmem:[%s1 + $0x50] sm:$0xff]
  %v34 = vld [vmem:[%s1 + $0x58] sm:$0xff]
  %v35 = vld [vmem:[%s1 + $0x60] sm:$0xff]
  %v36 = vld [vmem:[%s1 + $0x68] sm:$0xff]
  %v37 = vld [vmem:[%s1 + $0x70] sm:$0xff]
  %v38 = vld [vmem:[%s1 + $0x78] sm:$0xff]
  %v39 = vld [vmem:[%s1 + $0x80] sm:$0xff]
  %v40 = vld [vmem:[%s1 + $0x88] sm:$0xff]
  %v41 = vld [vmem:[%s1 + $0x90] sm:$0xff]
  %v42 = vld [vmem:[%s1 + $0x98] sm:$0xff]
  %v43 = vld [vmem:[%s1 + $0xa0] sm:$0xff]
  %v44 = vld [vmem:[%s1 + $0xa8] sm:$0xff]
  %v45 = vld [vmem:[%s1 + $0xb0] sm:$0xff]
  %v46 = vld [vmem:[%s1 + $0xb8] sm:$0xff]
  %v47 = vld [vmem:[%s1 + $0xc0] sm:$0xff]
  %v48 = vld [vmem:[%s1 + $0xc8] sm:$0xff]
  %v49 = vld [vmem:[%s1 + $0xd0] sm:$0xff]
  %v50 = vld [vmem:[%s1 + $0xd8] sm:$0xff]
  %v51 = vld [vmem:[%s1 + $0xe0] sm:$0xff]
  %v52 = vld [vmem:[%s1 + $0xe8] sm:$0xff]
  %v53 = vld [vmem:[%s1 + $0xf0] sm:$0xff]
  %v54 = vld [vmem:[%s1 + $0xf8] sm:$0xff]
  %v55 = vld [vmem:[%s2] sm:$0xff]
  %v57 = vlaneseq
  %v58 = vshrl.u32 %v57, 7
  %v59 = vsub.s32 0, %v58
  %v60 = vrot.slane %v55, %v59
  %v61 = vlaneseq
  %v62 = vshrl.u32 %v61, 7
  %v63 = vsub.s32 1, %v62
  %v64 = vrot.slane %v55, %v63
  %v65 = vlaneseq
  %v66 = vshrl.u32 %v65, 7
  %v67 = vsub.s32 2, %v66
  %v68 = vrot.slane %v55, %v67
  %v69 = vlaneseq
  %v70 = vshrl.u32 %v69, 7
  %v71 = vsub.s32 3, %v70
  %v72 = vrot.slane %v55, %v71
  %v73 = vlaneseq
  %v74 = vshrl.u32 %v73, 7
  %v75 = vsub.s32 4, %v74
  %v76 = vrot.slane %v55, %v75
  %v77 = vlaneseq
  %v78 = vshrl.u32 %v77, 7
  %v79 = vsub.s32 5, %v78
  %v80 = vrot.slane %v55, %v79
  %v81 = vlaneseq
  %v82 = vshrl.u32 %v81, 7
  %v83 = vsub.s32 6, %v82
  %v84 = vrot.slane %v55, %v83
  %v85 = vlaneseq
  %v86 = vshrl.u32 %v85, 7
  %v87 = vsub.s32 7, %v86
  %v88 = vrot.slane %v55, %v87
  %v99 = vunpack.c.l.b16 %v21
  %v100 = vunpack.c.l.b16 %v22
  %v101 = vpack.c.b16 %v100, %v99
  %v134 = vunpack.c.l.b16 %v23
  %v135 = vunpack.c.h.b16 %v23
  %v136 = vunpack.c.l.b16 %v24
  %v137 = vunpack.c.h.b16 %v24
  %v138 = vunpack.c.l.b16 %v25
  %v139 = vunpack.c.h.b16 %v25
  %v140 = vunpack.c.l.b16 %v26
  %v141 = vunpack.c.h.b16 %v26
  %v142 = vunpack.c.l.b16 %v27
  %v143 = vunpack.c.h.b16 %v27
  %v144 = vunpack.c.l.b16 %v28
  %v145 = vunpack.c.h.b16 %v28
  %v146 = vunpack.c.l.b16 %v29
  %v147 = vunpack.c.h.b16 %v29
  %v148 = vunpack.c.l.b16 %v30
  %v149 = vunpack.c.h.b16 %v30
  %v150 = vunpack.c.l.b16 %v31
  %v151 = vunpack.c.h.b16 %v31
  %v152 = vunpack.c.l.b16 %v32
  %v153 = vunpack.c.h.b16 %v32
  %v154 = vunpack.c.l.b16 %v33
  %v155 = vunpack.c.h.b16 %v33
  %v156 = vunpack.c.l.b16 %v34
  %v157 = vunpack.c.h.b16 %v34
  %v158 = vunpack.c.l.b16 %v35
  %v159 = vunpack.c.h.b16 %v35
  %v160 = vunpack.c.l.b16 %v36
  %v161 = vunpack.c.h.b16 %v36
  %v162 = vunpack.c.l.b16 %v37
  %v163 = vunpack.c.h.b16 %v37
  %v164 = vunpack.c.l.b16 %v38
  %v165 = vunpack.c.h.b16 %v38
  %v166 = vunpack.c.l.b16 %v39
  %v167 = vunpack.c.h.b16 %v39
  %v168 = vunpack.c.l.b16 %v40
  %v169 = vunpack.c.h.b16 %v40
  %v170 = vunpack.c.l.b16 %v41
  %v171 = vunpack.c.h.b16 %v41
  %v172 = vunpack.c.l.b16 %v42
  %v173 = vunpack.c.h.b16 %v42
  %v174 = vunpack.c.l.b16 %v43
  %v175 = vunpack.c.h.b16 %v43
  %v176 = vunpack.c.l.b16 %v44
  %v177 = vunpack.c.h.b16 %v44
  %v178 = vunpack.c.l.b16 %v45
  %v179 = vunpack.c.h.b16 %v45
  %v180 = vunpack.c.l.b16 %v46
  %v181 = vunpack.c.h.b16 %v46
  %v182 = vunpack.c.l.b16 %v47
  %v183 = vunpack.c.h.b16 %v47
  %v184 = vunpack.c.l.b16 %v48
  %v185 = vunpack.c.h.b16 %v48
  %v186 = vunpack.c.l.b16 %v49
  %v187 = vunpack.c.h.b16 %v49
  %v188 = vunpack.c.l.b16 %v50
  %v189 = vunpack.c.h.b16 %v50
  %v190 = vunpack.c.l.b16 %v51
  %v191 = vunpack.c.h.b16 %v51
  %v192 = vunpack.c.l.b16 %v52
  %v193 = vunpack.c.h.b16 %v52
  %v194 = vunpack.c.l.b16 %v53
  %v195 = vunpack.c.h.b16 %v53
  %v196 = vunpack.c.l.b16 %v54
  %v197 = vunpack.c.h.b16 %v54
  %v198 = vpack.c.b16 %v142, %v134
  %v199 = vpack.c.b16 %v143, %v135
  %v200 = vpack.c.b16 %v144, %v136
  %v201 = vpack.c.b16 %v145, %v137
  %v202 = vpack.c.b16 %v146, %v138
  %v203 = vpack.c.b16 %v147, %v139
  %v204 = vpack.c.b16 %v148, %v140
  %v205 = vpack.c.b16 %v149, %v141
  %v206 = vpack.c.b16 %v158, %v150
  %v207 = vpack.c.b16 %v159, %v151
  %v208 = vpack.c.b16 %v160, %v152
  %v209 = vpack.c.b16 %v161, %v153
  %v210 = vpack.c.b16 %v162, %v154
  %v211 = vpack.c.b16 %v163, %v155
  %v212 = vpack.c.b16 %v164, %v156
  %v213 = vpack.c.b16 %v165, %v157
  %v214 = vpack.c.b16 %v174, %v166
  %v215 = vpack.c.b16 %v175, %v167
  %v216 = vpack.c.b16 %v176, %v168
  %v217 = vpack.c.b16 %v177, %v169
  %v218 = vpack.c.b16 %v178, %v170
  %v219 = vpack.c.b16 %v179, %v171
  %v220 = vpack.c.b16 %v180, %v172
  %v221 = vpack.c.b16 %v181, %v173
  %v222 = vpack.c.b16 %v190, %v182
  %v223 = vpack.c.b16 %v191, %v183
  %v224 = vpack.c.b16 %v192, %v184
  %v225 = vpack.c.b16 %v193, %v185
  %v226 = vpack.c.b16 %v194, %v186
  %v227 = vpack.c.b16 %v195, %v187
  %v228 = vpack.c.b16 %v196, %v188
  %v229 = vpack.c.b16 %v197, %v189
  %vm262 = vcmask 523264
  %v264 = vsel %vm262, %v101, 0
  %266 = vmatprep.subr.bf16.mxu0 %v199
  %267 = vmatpush1.bf16.msra.mxu0 %v198
  %268 = vmatprep.subr.bf16.mxu0 %v207
  %269 = vmatpush1.bf16.msra.mxu0 %v206
  %270 = vmatprep.subr.bf16.mxu0 %v215
  %271 = vmatpush1.bf16.msra.mxu0 %v214
  %272 = vmatprep.subr.bf16.mxu0 %v223
  %273 = vmatpush1.bf16.msra.mxu0 %v222
  %274 = vmatprep.subr.bf16.mxu0 0
  %275 = vmatpush1.bf16.msra.mxu0 0
  %276 = vmatprep.subr.bf16.mxu0 0
  %277 = vmatpush1.bf16.msra.mxu0 0
  %278 = vmatprep.subr.bf16.mxu0 0
  %279 = vmatpush1.bf16.msra.mxu0 0
  %280 = vmatprep.subr.bf16.mxu0 0
  %281 = vmatpush1.bf16.msra.mxu0 0
  %282 = vmatprep.subr.bf16.mxu0 0
  %283 = vmatpush1.bf16.msra.mxu0 0
  %284 = vmatprep.subr.bf16.mxu0 0
  %285 = vmatpush1.bf16.msra.mxu0 0
  %286 = vmatprep.subr.bf16.mxu0 0
  %287 = vmatpush1.bf16.msra.mxu0 0
  %288 = vmatprep.subr.bf16.mxu0 0
  %289 = vmatpush1.bf16.msra.mxu0 0
  %290 = vmatprep.subr.bf16.mxu0 0
  %291 = vmatpush1.bf16.msra.mxu0 0
  %292 = vmatprep.subr.bf16.mxu0 0
  %293 = vmatpush1.bf16.msra.mxu0 0
  %294 = vmatprep.subr.bf16.mxu0 0
  %295 = vmatpush1.bf16.msra.mxu0 0
  %296 = vmatprep.subr.bf16.mxu0 0
  %297 = vmatpush1.bf16.msra.mxu0 0
  %298 = vmatprep.mubr.bf16.mxu0 0
  %299 = vmatmul.mubr.bf16.gmra.mrb[0].mxu0 %v264
  %v300 = vpop.f32.mrb[0].mxu0
  %v301 = vadd.f32 %v60, %v300
  %v302 = vpop.f32.mrb[0].mxu0
  %v303 = vadd.f32 %v64, %v302
  %v304 = vpop.f32.mrb[0].mxu0
  %v305 = vadd.f32 %v60, %v304
  %v306 = vpop.f32.mrb[0].mxu0
  %v307 = vadd.f32 %v64, %v306
  %308 = vdwg.mxu0
  %309 = vmatprep.subr.bf16.mxu0 %v201
  %310 = vmatpush1.bf16.msra.mxu0 %v200
  %311 = vmatprep.subr.bf16.mxu0 %v209
  %312 = vmatpush1.bf16.msra.mxu0 %v208
  %313 = vmatprep.subr.bf16.mxu0 %v217
  %314 = vmatpush1.bf16.msra.mxu0 %v216
  %315 = vmatprep.subr.bf16.mxu0 %v225
  %316 = vmatpush1.bf16.msra.mxu0 %v224
  %317 = vmatprep.subr.bf16.mxu0 0
  %318 = vmatpush1.bf16.msra.mxu0 0
  %319 = vmatprep.subr.bf16.mxu0 0
  %320 = vmatpush1.bf16.msra.mxu0 0
  %321 = vmatprep.subr.bf16.mxu0 0
  %322 = vmatpush1.bf16.msra.mxu0 0
  %323 = vmatprep.subr.bf16.mxu0 0
  %324 = vmatpush1.bf16.msra.mxu0 0
  %325 = vmatprep.subr.bf16.mxu0 0
  %326 = vmatpush1.bf16.msra.mxu0 0
  %327 = vmatprep.subr.bf16.mxu0 0
  %328 = vmatpush1.bf16.msra.mxu0 0
  %329 = vmatprep.subr.bf16.mxu0 0
  %330 = vmatpush1.bf16.msra.mxu0 0
  %331 = vmatprep.subr.bf16.mxu0 0
  %332 = vmatpush1.bf16.msra.mxu0 0
  %333 = vmatprep.subr.bf16.mxu0 0
  %334 = vmatpush1.bf16.msra.mxu0 0
  %335 = vmatprep.subr.bf16.mxu0 0
  %336 = vmatpush1.bf16.msra.mxu0 0
  %337 = vmatprep.subr.bf16.mxu0 0
  %338 = vmatpush1.bf16.msra.mxu0 0
  %339 = vmatprep.subr.bf16.mxu0 0
  %340 = vmatpush1.bf16.msra.mxu0 0
  %341 = vmatprep.mubr.bf16.mxu0 0
  %342 = vmatmul.mubr.bf16.gmra.mrb[0].mxu0 %v264
  %v343 = vpop.f32.mrb[0].mxu0
  %v344 = vadd.f32 %v68, %v343
  %v345 = vpop.f32.mrb[0].mxu0
  %v346 = vadd.f32 %v72, %v345
  %v347 = vpop.f32.mrb[0].mxu0
  %v348 = vadd.f32 %v68, %v347
  %v349 = vpop.f32.mrb[0].mxu0
  %v350 = vadd.f32 %v72, %v349
  %351 = vdwg.mxu0
  %352 = vmatprep.subr.bf16.mxu0 %v203
  %353 = vmatpush1.bf16.msra.mxu0 %v202
  %354 = vmatprep.subr.bf16.mxu0 %v211
  %355 = vmatpush1.bf16.msra.mxu0 %v210
  %356 = vmatprep.subr.bf16.mxu0 %v219
  %357 = vmatpush1.bf16.msra.mxu0 %v218
  %358 = vmatprep.subr.bf16.mxu0 %v227
  %359 = vmatpush1.bf16.msra.mxu0 %v226
  %360 = vmatprep.subr.bf16.mxu0 0
  %361 = vmatpush1.bf16.msra.mxu0 0
  %362 = vmatprep.subr.bf16.mxu0 0
  %363 = vmatpush1.bf16.msra.mxu0 0
  %364 = vmatprep.subr.bf16.mxu0 0
  %365 = vmatpush1.bf16.msra.mxu0 0
  %366 = vmatprep.subr.bf16.mxu0 0
  %367 = vmatpush1.bf16.msra.mxu0 0
  %368 = vmatprep.subr.bf16.mxu0 0
  %369 = vmatpush1.bf16.msra.mxu0 0
  %370 = vmatprep.subr.bf16.mxu0 0
  %371 = vmatpush1.bf16.msra.mxu0 0
  %372 = vmatprep.subr.bf16.mxu0 0
  %373 = vmatpush1.bf16.msra.mxu0 0
  %374 = vmatprep.subr.bf16.mxu0 0
  %375 = vmatpush1.bf16.msra.mxu0 0
  %376 = vmatprep.subr.bf16.mxu0 0
  %377 = vmatpush1.bf16.msra.mxu0 0
  %378 = vmatprep.subr.bf16.mxu0 0
  %379 = vmatpush1.bf16.msra.mxu0 0
  %380 = vmatprep.subr.bf16.mxu0 0
  %381 = vmatpush1.bf16.msra.mxu0 0
  %382 = vmatprep.subr.bf16.mxu0 0
  %383 = vmatpush1.bf16.msra.mxu0 0
  %384 = vmatprep.mubr.bf16.mxu0 0
  %385 = vmatmul.mubr.bf16.gmra.mrb[0].mxu0 %v264
  %v386 = vpop.f32.mrb[0].mxu0
  %v387 = vadd.f32 %v76, %v386
  %v388 = vpop.f32.mrb[0].mxu0
  %v389 = vadd.f32 %v80, %v388
  %v390 = vpop.f32.mrb[0].mxu0
  %v391 = vadd.f32 %v76, %v390
  %v392 = vpop.f32.mrb[0].mxu0
  %v393 = vadd.f32 %v80, %v392
  %394 = vdwg.mxu0
  %395 = vmatprep.subr.bf16.mxu0 %v205
  %396 = vmatpush1.bf16.msra.mxu0 %v204
  %397 = vmatprep.subr.bf16.mxu0 %v213
  %398 = vmatpush1.bf16.msra.mxu0 %v212
  %399 = vmatprep.subr.bf16.mxu0 %v221
  %400 = vmatpush1.bf16.msra.mxu0 %v220
  %401 = vmatprep.subr.bf16.mxu0 %v229
  %402 = vmatpush1.bf16.msra.mxu0 %v228
  %403 = vmatprep.subr.bf16.mxu0 0
  %404 = vmatpush1.bf16.msra.mxu0 0
  %405 = vmatprep.subr.bf16.mxu0 0
  %406 = vmatpush1.bf16.msra.mxu0 0
  %407 = vmatprep.subr.bf16.mxu0 0
  %408 = vmatpush1.bf16.msra.mxu0 0
  %409 = vmatprep.subr.bf16.mxu0 0
  %410 = vmatpush1.bf16.msra.mxu0 0
  %411 = vmatprep.subr.bf16.mxu0 0
  %412 = vmatpush1.bf16.msra.mxu0 0
  %413 = vmatprep.subr.bf16.mxu0 0
  %414 = vmatpush1.bf16.msra.mxu0 0
  %415 = vmatprep.subr.bf16.mxu0 0
  %416 = vmatpush1.bf16.msra.mxu0 0
  %417 = vmatprep.subr.bf16.mxu0 0
  %418 = vmatpush1.bf16.msra.mxu0 0
  %419 = vmatprep.subr.bf16.mxu0 0
  %420 = vmatpush1.bf16.msra.mxu0 0
  %421 = vmatprep.subr.bf16.mxu0 0
  %422 = vmatpush1.bf16.msra.mxu0 0
  %423 = vmatprep.subr.bf16.mxu0 0
  %424 = vmatpush1.bf16.msra.mxu0 0
  %425 = vmatprep.subr.bf16.mxu0 0
  %426 = vmatpush1.bf16.msra.mxu0 0
  %427 = vmatprep.mubr.bf16.mxu0 0
  %428 = vmatmul.mubr.bf16.gmra.mrb[0].mxu0 %v264
  %v429 = vpop.f32.mrb[0].mxu0
  %v430 = vadd.f32 %v84, %v429
  %v431 = vpop.f32.mrb[0].mxu0
  %v432 = vadd.f32 %v88, %v431
  %v433 = vpop.f32.mrb[0].mxu0
  %v434 = vadd.f32 %v84, %v433
  %v435 = vpop.f32.mrb[0].mxu0
  %v436 = vadd.f32 %v88, %v435
  %437 = vdwg.mxu0
  %v438 = vmax.f32 %v301, 0.0
  %v439 = vmax.f32 %v303, 0.0
  %v440 = vmax.f32 %v344, 0.0
  %v441 = vmax.f32 %v346, 0.0
  %v442 = vmax.f32 %v387, 0.0
  %v443 = vmax.f32 %v389, 0.0
  %v444 = vmax.f32 %v430, 0.0
  %v445 = vmax.f32 %v432, 0.0
  %v446 = vmax.f32 %v305, 0.0
  %v447 = vmax.f32 %v307, 0.0
  %v448 = vmax.f32 %v348, 0.0
  %v449 = vmax.f32 %v350, 0.0
  %v450 = vmax.f32 %v391, 0.0
  %v451 = vmax.f32 %v393, 0.0
  %v452 = vmax.f32 %v434, 0.0
  %v453 = vmax.f32 %v436, 0.0
  %v454 = vpack.c.bf16 %v446, %v438
  %v455 = vpack.c.bf16 %v447, %v439
  %v456 = vpack.c.bf16 %v448, %v440
  %v457 = vpack.c.bf16 %v449, %v441
  %v458 = vpack.c.bf16 %v450, %v442
  %v459 = vpack.c.bf16 %v451, %v443
  %v460 = vpack.c.bf16 %v452, %v444
  %v461 = vpack.c.bf16 %v453, %v445
  %v462 = vld [vmem:[%s3] sm:$0xf]
  %v463 = vld [vmem:[%s3 + $0x4] sm:$0xf]
  %v464 = vld [vmem:[%s3 + $0x8] sm:$0xf]
  %v465 = vld [vmem:[%s3 + $0xc] sm:$0xf]
  %v466 = vld [vmem:[%s3 + $0x10] sm:$0xf]
  %v467 = vld [vmem:[%s3 + $0x14] sm:$0xf]
  %v468 = vld [vmem:[%s3 + $0x18] sm:$0xf]
  %v469 = vld [vmem:[%s3 + $0x1c] sm:$0xf]
  %v470 = vld [vmem:[%s3 + $0x20] sm:$0xf]
  %v471 = vld [vmem:[%s3 + $0x24] sm:$0xf]
  %v472 = vld [vmem:[%s3 + $0x28] sm:$0xf]
  %v473 = vld [vmem:[%s3 + $0x2c] sm:$0xf]
  %v474 = vld [vmem:[%s3 + $0x30] sm:$0xf]
  %v475 = vld [vmem:[%s3 + $0x34] sm:$0xf]
  %v476 = vld [vmem:[%s3 + $0x38] sm:$0xf]
  %v477 = vld [vmem:[%s3 + $0x3c] sm:$0xf]
  %v478 = vld [vmem:[%s3 + $0x40] sm:$0xf]
  %v479 = vld [vmem:[%s3 + $0x44] sm:$0xf]
  %v480 = vld [vmem:[%s3 + $0x48] sm:$0xf]
  %v481 = vld [vmem:[%s3 + $0x4c] sm:$0xf]
  %v482 = vld [vmem:[%s3 + $0x50] sm:$0xf]
  %v483 = vld [vmem:[%s3 + $0x54] sm:$0xf]
  %v484 = vld [vmem:[%s3 + $0x58] sm:$0xf]
  %v485 = vld [vmem:[%s3 + $0x5c] sm:$0xf]
  %v486 = vld [vmem:[%s3 + $0x60] sm:$0xf]
  %v487 = vld [vmem:[%s3 + $0x64] sm:$0xf]
  %v488 = vld [vmem:[%s3 + $0x68] sm:$0xf]
  %v489 = vld [vmem:[%s3 + $0x6c] sm:$0xf]
  %v490 = vld [vmem:[%s3 + $0x70] sm:$0xf]
  %v491 = vld [vmem:[%s3 + $0x74] sm:$0xf]
  %v492 = vld [vmem:[%s3 + $0x78] sm:$0xf]
  %v493 = vld [vmem:[%s3 + $0x7c] sm:$0xf]
  %v494 = vld [vmem:[%s3 + $0x80] sm:$0xf]
  %v495 = vld [vmem:[%s3 + $0x84] sm:$0xf]
  %v496 = vld [vmem:[%s3 + $0x88] sm:$0xf]
  %v497 = vld [vmem:[%s3 + $0x8c] sm:$0xf]
  %v498 = vld [vmem:[%s3 + $0x90] sm:$0xf]
  %v499 = vld [vmem:[%s3 + $0x94] sm:$0xf]
  %v500 = vld [vmem:[%s3 + $0x98] sm:$0xf]
  %v501 = vld [vmem:[%s3 + $0x9c] sm:$0xf]
  %v502 = vld [vmem:[%s3 + $0xa0] sm:$0xf]
  %v503 = vld [vmem:[%s3 + $0xa4] sm:$0xf]
  %v504 = vld [vmem:[%s3 + $0xa8] sm:$0xf]
  %v505 = vld [vmem:[%s3 + $0xac] sm:$0xf]
  %v506 = vld [vmem:[%s3 + $0xb0] sm:$0xf]
  %v507 = vld [vmem:[%s3 + $0xb4] sm:$0xf]
  %v508 = vld [vmem:[%s3 + $0xb8] sm:$0xf]
  %v509 = vld [vmem:[%s3 + $0xbc] sm:$0xf]
  %v510 = vld [vmem:[%s3 + $0xc0] sm:$0xf]
  %v511 = vld [vmem:[%s3 + $0xc4] sm:$0xf]
  %v512 = vld [vmem:[%s3 + $0xc8] sm:$0xf]
  %v513 = vld [vmem:[%s3 + $0xcc] sm:$0xf]
  %v514 = vld [vmem:[%s3 + $0xd0] sm:$0xf]
  %v515 = vld [vmem:[%s3 + $0xd4] sm:$0xf]
  %v516 = vld [vmem:[%s3 + $0xd8] sm:$0xf]
  %v517 = vld [vmem:[%s3 + $0xdc] sm:$0xf]
  %v518 = vld [vmem:[%s3 + $0xe0] sm:$0xf]
  %v519 = vld [vmem:[%s3 + $0xe4] sm:$0xf]
  %v520 = vld [vmem:[%s3 + $0xe8] sm:$0xf]
  %v521 = vld [vmem:[%s3 + $0xec] sm:$0xf]
  %v522 = vld [vmem:[%s3 + $0xf0] sm:$0xf]
  %v523 = vld [vmem:[%s3 + $0xf4] sm:$0xf]
  %v524 = vld [vmem:[%s3 + $0xf8] sm:$0xf]
  %v525 = vld [vmem:[%s3 + $0xfc] sm:$0xf]
  %v526 = vld [vmem:[%s3 + $0x100] sm:$0xf]
  %v527 = vld [vmem:[%s3 + $0x104] sm:$0xf]
  %v528 = vld [vmem:[%s3 + $0x108] sm:$0xf]
  %v529 = vld [vmem:[%s3 + $0x10c] sm:$0xf]
  %v530 = vld [vmem:[%s3 + $0x110] sm:$0xf]
  %v531 = vld [vmem:[%s3 + $0x114] sm:$0xf]
  %v532 = vld [vmem:[%s3 + $0x118] sm:$0xf]
  %v533 = vld [vmem:[%s3 + $0x11c] sm:$0xf]
  %v534 = vld [vmem:[%s3 + $0x120] sm:$0xf]
  %v535 = vld [vmem:[%s3 + $0x124] sm:$0xf]
  %v536 = vld [vmem:[%s3 + $0x128] sm:$0xf]
  %v537 = vld [vmem:[%s3 + $0x12c] sm:$0xf]
  %v538 = vld [vmem:[%s3 + $0x130] sm:$0xf]
  %v539 = vld [vmem:[%s3 + $0x134] sm:$0xf]
  %v540 = vld [vmem:[%s3 + $0x138] sm:$0xf]
  %v541 = vld [vmem:[%s3 + $0x13c] sm:$0xf]
  %v542 = vld [vmem:[%s3 + $0x140] sm:$0xf]
  %v543 = vld [vmem:[%s3 + $0x144] sm:$0xf]
  %v544 = vld [vmem:[%s3 + $0x148] sm:$0xf]
  %v545 = vld [vmem:[%s3 + $0x14c] sm:$0xf]
  %v546 = vld [vmem:[%s3 + $0x150] sm:$0xf]
  %v547 = vld [vmem:[%s3 + $0x154] sm:$0xf]
  %v548 = vld [vmem:[%s3 + $0x158] sm:$0xf]
  %v549 = vld [vmem:[%s3 + $0x15c] sm:$0xf]
  %v550 = vld [vmem:[%s3 + $0x160] sm:$0xf]
  %v551 = vld [vmem:[%s3 + $0x164] sm:$0xf]
  %v552 = vld [vmem:[%s3 + $0x168] sm:$0xf]
  %v553 = vld [vmem:[%s3 + $0x16c] sm:$0xf]
  %v554 = vld [vmem:[%s3 + $0x170] sm:$0xf]
  %v555 = vld [vmem:[%s3 + $0x174] sm:$0xf]
  %v556 = vld [vmem:[%s3 + $0x178] sm:$0xf]
  %v557 = vld [vmem:[%s3 + $0x17c] sm:$0xf]
  %v558 = vld [vmem:[%s3 + $0x180] sm:$0xf]
  %v559 = vld [vmem:[%s3 + $0x184] sm:$0xf]
  %v560 = vld [vmem:[%s3 + $0x188] sm:$0xf]
  %v561 = vld [vmem:[%s3 + $0x18c] sm:$0xf]
  %v562 = vld [vmem:[%s3 + $0x190] sm:$0xf]
  %v563 = vld [vmem:[%s3 + $0x194] sm:$0xf]
  %v564 = vld [vmem:[%s3 + $0x198] sm:$0xf]
  %v565 = vld [vmem:[%s3 + $0x19c] sm:$0xf]
  %v566 = vld [vmem:[%s3 + $0x1a0] sm:$0xf]
  %v567 = vld [vmem:[%s3 + $0x1a4] sm:$0xf]
  %v568 = vld [vmem:[%s3 + $0x1a8] sm:$0xf]
  %v569 = vld [vmem:[%s3 + $0x1ac] sm:$0xf]
  %v570 = vld [vmem:[%s3 + $0x1b0] sm:$0xf]
  %v571 = vld [vmem:[%s3 + $0x1b4] sm:$0xf]
  %v572 = vld [vmem:[%s3 + $0x1b8] sm:$0xf]
  %v573 = vld [vmem:[%s3 + $0x1bc] sm:$0xf]
  %v574 = vld [vmem:[%s3 + $0x1c0] sm:$0xf]
  %v575 = vld [vmem:[%s3 + $0x1c4] sm:$0xf]
  %v576 = vld [vmem:[%s3 + $0x1c8] sm:$0xf]
  %v577 = vld [vmem:[%s3 + $0x1cc] sm:$0xf]
  %v578 = vld [vmem:[%s3 + $0x1d0] sm:$0xf]
  %v579 = vld [vmem:[%s3 + $0x1d4] sm:$0xf]
  %v580 = vld [vmem:[%s3 + $0x1d8] sm:$0xf]
  %v581 = vld [vmem:[%s3 + $0x1dc] sm:$0xf]
  %v582 = vld [vmem:[%s3 + $0x1e0] sm:$0xf]
  %v583 = vld [vmem:[%s3 + $0x1e4] sm:$0xf]
  %v584 = vld [vmem:[%s3 + $0x1e8] sm:$0xf]
  %v585 = vld [vmem:[%s3 + $0x1ec] sm:$0xf]
  %v586 = vld [vmem:[%s3 + $0x1f0] sm:$0xf]
  %v587 = vld [vmem:[%s3 + $0x1f4] sm:$0xf]
  %v588 = vld [vmem:[%s3 + $0x1f8] sm:$0xf]
  %v589 = vld [vmem:[%s3 + $0x1fc] sm:$0xf]
  %v590 = vld [vmem:[%s4] sm:$0x1]
  %v592 = vlaneseq
  %v593 = vshrl.u32 %v592, 7
  %v594 = vsub.s32 0, %v593
  %v595 = vrot.slane %v590, %v594
  %v725 = vunpack.c.l.b16 %v462
  %v726 = vunpack.c.l.b16 %v463
  %v727 = vunpack.c.l.b16 %v464
  %v728 = vunpack.c.l.b16 %v465
  %v729 = vunpack.c.l.b16 %v466
  %v730 = vunpack.c.l.b16 %v467
  %v731 = vunpack.c.l.b16 %v468
  %v732 = vunpack.c.l.b16 %v469
  %v733 = vunpack.c.l.b16 %v470
  %v734 = vunpack.c.l.b16 %v471
  %v735 = vunpack.c.l.b16 %v472
  %v736 = vunpack.c.l.b16 %v473
  %v737 = vunpack.c.l.b16 %v474
  %v738 = vunpack.c.l.b16 %v475
  %v739 = vunpack.c.l.b16 %v476
  %v740 = vunpack.c.l.b16 %v477
  %v741 = vunpack.c.l.b16 %v478
  %v742 = vunpack.c.l.b16 %v479
  %v743 = vunpack.c.l.b16 %v480
  %v744 = vunpack.c.l.b16 %v481
  %v745 = vunpack.c.l.b16 %v482
  %v746 = vunpack.c.l.b16 %v483
  %v747 = vunpack.c.l.b16 %v484
  %v748 = vunpack.c.l.b16 %v485
  %v749 = vunpack.c.l.b16 %v486
  %v750 = vunpack.c.l.b16 %v487
  %v751 = vunpack.c.l.b16 %v488
  %v752 = vunpack.c.l.b16 %v489
  %v753 = vunpack.c.l.b16 %v490
  %v754 = vunpack.c.l.b16 %v491
  %v755 = vunpack.c.l.b16 %v492
  %v756 = vunpack.c.l.b16 %v493
  %v757 = vunpack.c.l.b16 %v494
  %v758 = vunpack.c.l.b16 %v495
  %v759 = vunpack.c.l.b16 %v496
  %v760 = vunpack.c.l.b16 %v497
  %v761 = vunpack.c.l.b16 %v498
  %v762 = vunpack.c.l.b16 %v499
  %v763 = vunpack.c.l.b16 %v500
  %v764 = vunpack.c.l.b16 %v501
  %v765 = vunpack.c.l.b16 %v502
  %v766 = vunpack.c.l.b16 %v503
  %v767 = vunpack.c.l.b16 %v504
  %v768 = vunpack.c.l.b16 %v505
  %v769 = vunpack.c.l.b16 %v506
  %v770 = vunpack.c.l.b16 %v507
  %v771 = vunpack.c.l.b16 %v508
  %v772 = vunpack.c.l.b16 %v509
  %v773 = vunpack.c.l.b16 %v510
  %v774 = vunpack.c.l.b16 %v511
  %v775 = vunpack.c.l.b16 %v512
  %v776 = vunpack.c.l.b16 %v513
  %v777 = vunpack.c.l.b16 %v514
  %v778 = vunpack.c.l.b16 %v515
  %v779 = vunpack.c.l.b16 %v516
  %v780 = vunpack.c.l.b16 %v517
  %v781 = vunpack.c.l.b16 %v518
  %v782 = vunpack.c.l.b16 %v519
  %v783 = vunpack.c.l.b16 %v520
  %v784 = vunpack.c.l.b16 %v521
  %v785 = vunpack.c.l.b16 %v522
  %v786 = vunpack.c.l.b16 %v523
  %v787 = vunpack.c.l.b16 %v524
  %v788 = vunpack.c.l.b16 %v525
  %v789 = vunpack.c.l.b16 %v526
  %v790 = vunpack.c.l.b16 %v527
  %v791 = vunpack.c.l.b16 %v528
  %v792 = vunpack.c.l.b16 %v529
  %v793 = vunpack.c.l.b16 %v530
  %v794 = vunpack.c.l.b16 %v531
  %v795 = vunpack.c.l.b16 %v532
  %v796 = vunpack.c.l.b16 %v533
  %v797 = vunpack.c.l.b16 %v534
  %v798 = vunpack.c.l.b16 %v535
  %v799 = vunpack.c.l.b16 %v536
  %v800 = vunpack.c.l.b16 %v537
  %v801 = vunpack.c.l.b16 %v538
  %v802 = vunpack.c.l.b16 %v539
  %v803 = vunpack.c.l.b16 %v540
  %v804 = vunpack.c.l.b16 %v541
  %v805 = vunpack.c.l.b16 %v542
  %v806 = vunpack.c.l.b16 %v543
  %v807 = vunpack.c.l.b16 %v544
  %v808 = vunpack.c.l.b16 %v545
  %v809 = vunpack.c.l.b16 %v546
  %v810 = vunpack.c.l.b16 %v547
  %v811 = vunpack.c.l.b16 %v548
  %v812 = vunpack.c.l.b16 %v549
  %v813 = vunpack.c.l.b16 %v550
  %v814 = vunpack.c.l.b16 %v551
  %v815 = vunpack.c.l.b16 %v552
  %v816 = vunpack.c.l.b16 %v553
  %v817 = vunpack.c.l.b16 %v554
  %v818 = vunpack.c.l.b16 %v555
  %v819 = vunpack.c.l.b16 %v556
  %v820 = vunpack.c.l.b16 %v557
  %v821 = vunpack.c.l.b16 %v558
  %v822 = vunpack.c.l.b16 %v559
  %v823 = vunpack.c.l.b16 %v560
  %v824 = vunpack.c.l.b16 %v561
  %v825 = vunpack.c.l.b16 %v562
  %v826 = vunpack.c.l.b16 %v563
  %v827 = vunpack.c.l.b16 %v564
  %v828 = vunpack.c.l.b16 %v565
  %v829 = vunpack.c.l.b16 %v566
  %v830 = vunpack.c.l.b16 %v567
  %v831 = vunpack.c.l.b16 %v568
  %v832 = vunpack.c.l.b16 %v569
  %v833 = vunpack.c.l.b16 %v570
  %v834 = vunpack.c.l.b16 %v571
  %v835 = vunpack.c.l.b16 %v572
  %v836 = vunpack.c.l.b16 %v573
  %v837 = vunpack.c.l.b16 %v574
  %v838 = vunpack.c.l.b16 %v575
  %v839 = vunpack.c.l.b16 %v576
  %v840 = vunpack.c.l.b16 %v577
  %v841 = vunpack.c.l.b16 %v578
  %v842 = vunpack.c.l.b16 %v579
  %v843 = vunpack.c.l.b16 %v580
  %v844 = vunpack.c.l.b16 %v581
  %v845 = vunpack.c.l.b16 %v582
  %v846 = vunpack.c.l.b16 %v583
  %v847 = vunpack.c.l.b16 %v584
  %v848 = vunpack.c.l.b16 %v585
  %v849 = vunpack.c.l.b16 %v586
  %v850 = vunpack.c.l.b16 %v587
  %v851 = vunpack.c.l.b16 %v588
  %v852 = vunpack.c.l.b16 %v589
  %v853 = vpack.c.b16 %v726, %v725
  %v854 = vpack.c.b16 %v728, %v727
  %v855 = vpack.c.b16 %v730, %v729
  %v856 = vpack.c.b16 %v732, %v731
  %v857 = vpack.c.b16 %v734, %v733
  %v858 = vpack.c.b16 %v736, %v735
  %v859 = vpack.c.b16 %v738, %v737
  %v860 = vpack.c.b16 %v740, %v739
  %v861 = vpack.c.b16 %v742, %v741
  %v862 = vpack.c.b16 %v744, %v743
  %v863 = vpack.c.b16 %v746, %v745
  %v864 = vpack.c.b16 %v748, %v747
  %v865 = vpack.c.b16 %v750, %v749
  %v866 = vpack.c.b16 %v752, %v751
  %v867 = vpack.c.b16 %v754, %v753
  %v868 = vpack.c.b16 %v756, %v755
  %v869 = vpack.c.b16 %v758, %v757
  %v870 = vpack.c.b16 %v760, %v759
  %v871 = vpack.c.b16 %v762, %v761
  %v872 = vpack.c.b16 %v764, %v763
  %v873 = vpack.c.b16 %v766, %v765
  %v874 = vpack.c.b16 %v768, %v767
  %v875 = vpack.c.b16 %v770, %v769
  %v876 = vpack.c.b16 %v772, %v771
  %v877 = vpack.c.b16 %v774, %v773
  %v878 = vpack.c.b16 %v776, %v775
  %v879 = vpack.c.b16 %v778, %v777
  %v880 = vpack.c.b16 %v780, %v779
  %v881 = vpack.c.b16 %v782, %v781
  %v882 = vpack.c.b16 %v784, %v783
  %v883 = vpack.c.b16 %v786, %v785
  %v884 = vpack.c.b16 %v788, %v787
  %v885 = vpack.c.b16 %v790, %v789
  %v886 = vpack.c.b16 %v792, %v791
  %v887 = vpack.c.b16 %v794, %v793
  %v888 = vpack.c.b16 %v796, %v795
  %v889 = vpack.c.b16 %v798, %v797
  %v890 = vpack.c.b16 %v800, %v799
  %v891 = vpack.c.b16 %v802, %v801
  %v892 = vpack.c.b16 %v804, %v803
  %v893 = vpack.c.b16 %v806, %v805
  %v894 = vpack.c.b16 %v808, %v807
  %v895 = vpack.c.b16 %v810, %v809
  %v896 = vpack.c.b16 %v812, %v811
  %v897 = vpack.c.b16 %v814, %v813
  %v898 = vpack.c.b16 %v816, %v815
  %v899 = vpack.c.b16 %v818, %v817
  %v900 = vpack.c.b16 %v820, %v819
  %v901 = vpack.c.b16 %v822, %v821
  %v902 = vpack.c.b16 %v824, %v823
  %v903 = vpack.c.b16 %v826, %v825
  %v904 = vpack.c.b16 %v828, %v827
  %v905 = vpack.c.b16 %v830, %v829
  %v906 = vpack.c.b16 %v832, %v831
  %v907 = vpack.c.b16 %v834, %v833
  %v908 = vpack.c.b16 %v836, %v835
  %v909 = vpack.c.b16 %v838, %v837
  %v910 = vpack.c.b16 %v840, %v839
  %v911 = vpack.c.b16 %v842, %v841
  %v912 = vpack.c.b16 %v844, %v843
  %v913 = vpack.c.b16 %v846, %v845
  %v914 = vpack.c.b16 %v848, %v847
  %v915 = vpack.c.b16 %v850, %v849
  %v916 = vpack.c.b16 %v852, %v851
  %981 = vmatprep.subr.bf16.mxu0 0
  %982 = vmatpush1.bf16.msra.mxu0 %v853
  %983 = vmatprep.subr.bf16.mxu0 0
  %984 = vmatpush1.bf16.msra.mxu0 %v854
  %985 = vmatprep.subr.bf16.mxu0 0
  %986 = vmatpush1.bf16.msra.mxu0 %v855
  %987 = vmatprep.subr.bf16.mxu0 0
  %988 = vmatpush1.bf16.msra.mxu0 %v856
  %989 = vmatprep.subr.bf16.mxu0 0
  %990 = vmatpush1.bf16.msra.mxu0 %v857
  %991 = vmatprep.subr.bf16.mxu0 0
  %992 = vmatpush1.bf16.msra.mxu0 %v858
  %993 = vmatprep.subr.bf16.mxu0 0
  %994 = vmatpush1.bf16.msra.mxu0 %v859
  %995 = vmatprep.subr.bf16.mxu0 0
  %996 = vmatpush1.bf16.msra.mxu0 %v860
  %997 = vmatprep.subr.bf16.mxu0 0
  %998 = vmatpush1.bf16.msra.mxu0 %v861
  %999 = vmatprep.subr.bf16.mxu0 0
  %1000 = vmatpush1.bf16.msra.mxu0 %v862
  %1001 = vmatprep.subr.bf16.mxu0 0
  %1002 = vmatpush1.bf16.msra.mxu0 %v863
  %1003 = vmatprep.subr.bf16.mxu0 0
  %1004 = vmatpush1.bf16.msra.mxu0 %v864
  %1005 = vmatprep.subr.bf16.mxu0 0
  %1006 = vmatpush1.bf16.msra.mxu0 %v865
  %1007 = vmatprep.subr.bf16.mxu0 0
  %1008 = vmatpush1.bf16.msra.mxu0 %v866
  %1009 = vmatprep.subr.bf16.mxu0 0
  %1010 = vmatpush1.bf16.msra.mxu0 %v867
  %1011 = vmatprep.subr.bf16.mxu0 0
  %1012 = vmatpush1.bf16.msra.mxu0 %v868
  %1013 = vmatprep.mubr.bf16.mxu0 %v455
  %1014 = vmatmul.mubr.bf16.gmra.mrb[0].mxu0 %v454
  %v1015 = vpop.f32.mrb[0].mxu0
  %v1016 = vadd.f32 %v595, %v1015
  %v1017 = vpop.f32.mrb[0].mxu0
  %v1018 = vpop.f32.mrb[0].mxu0
  %v1019 = vadd.f32 %v595, %v1018
  %v1020 = vpop.f32.mrb[0].mxu0
  %1021 = vdwg.mxu0
  %1022 = vmatprep.subr.bf16.mxu0 0
  %1023 = vmatpush1.bf16.msra.mxu0 %v869
  %1024 = vmatprep.subr.bf16.mxu0 0
  %1025 = vmatpush1.bf16.msra.mxu0 %v870
  %1026 = vmatprep.subr.bf16.mxu0 0
  %1027 = vmatpush1.bf16.msra.mxu0 %v871
  %1028 = vmatprep.subr.bf16.mxu0 0
  %1029 = vmatpush1.bf16.msra.mxu0 %v872
  %1030 = vmatprep.subr.bf16.mxu0 0
  %1031 = vmatpush1.bf16.msra.mxu0 %v873
  %1032 = vmatprep.subr.bf16.mxu0 0
  %1033 = vmatpush1.bf16.msra.mxu0 %v874
  %1034 = vmatprep.subr.bf16.mxu0 0
  %1035 = vmatpush1.bf16.msra.mxu0 %v875
  %1036 = vmatprep.subr.bf16.mxu0 0
  %1037 = vmatpush1.bf16.msra.mxu0 %v876
  %1038 = vmatprep.subr.bf16.mxu0 0
  %1039 = vmatpush1.bf16.msra.mxu0 %v877
  %1040 = vmatprep.subr.bf16.mxu0 0
  %1041 = vmatpush1.bf16.msra.mxu0 %v878
  %1042 = vmatprep.subr.bf16.mxu0 0
  %1043 = vmatpush1.bf16.msra.mxu0 %v879
  %1044 = vmatprep.subr.bf16.mxu0 0
  %1045 = vmatpush1.bf16.msra.mxu0 %v880
  %1046 = vmatprep.subr.bf16.mxu0 0
  %1047 = vmatpush1.bf16.msra.mxu0 %v881
  %1048 = vmatprep.subr.bf16.mxu0 0
  %1049 = vmatpush1.bf16.msra.mxu0 %v882
  %1050 = vmatprep.subr.bf16.mxu0 0
  %1051 = vmatpush1.bf16.msra.mxu0 %v883
  %1052 = vmatprep.subr.bf16.mxu0 0
  %1053 = vmatpush1.bf16.msra.mxu0 %v884
  %1054 = vmatprep.mubr.bf16.mxu0 %v457
  %1055 = vmatmul.mubr.bf16.gmra.mrb[0].mxu0 %v456
  %v1056 = vpop.f32.mrb[0].mxu0
  %v1057 = vadd.f32 %v1016, %v1056
  %v1058 = vpop.f32.mrb[0].mxu0
  %v1059 = vpop.f32.mrb[0].mxu0
  %v1060 = vadd.f32 %v1019, %v1059
  %v1061 = vpop.f32.mrb[0].mxu0
  %1062 = vdwg.mxu0
  %1063 = vmatprep.subr.bf16.mxu0 0
  %1064 = vmatpush1.bf16.msra.mxu0 %v885
  %1065 = vmatprep.subr.bf16.mxu0 0
  %1066 = vmatpush1.bf16.msra.mxu0 %v886
  %1067 = vmatprep.subr.bf16.mxu0 0
  %1068 = vmatpush1.bf16.msra.mxu0 %v887
  %1069 = vmatprep.subr.bf16.mxu0 0
  %1070 = vmatpush1.bf16.msra.mxu0 %v888
  %1071 = vmatprep.subr.bf16.mxu0 0
  %1072 = vmatpush1.bf16.msra.mxu0 %v889
  %1073 = vmatprep.subr.bf16.mxu0 0
  %1074 = vmatpush1.bf16.msra.mxu0 %v890
  %1075 = vmatprep.subr.bf16.mxu0 0
  %1076 = vmatpush1.bf16.msra.mxu0 %v891
  %1077 = vmatprep.subr.bf16.mxu0 0
  %1078 = vmatpush1.bf16.msra.mxu0 %v892
  %1079 = vmatprep.subr.bf16.mxu0 0
  %1080 = vmatpush1.bf16.msra.mxu0 %v893
  %1081 = vmatprep.subr.bf16.mxu0 0
  %1082 = vmatpush1.bf16.msra.mxu0 %v894
  %1083 = vmatprep.subr.bf16.mxu0 0
  %1084 = vmatpush1.bf16.msra.mxu0 %v895
  %1085 = vmatprep.subr.bf16.mxu0 0
  %1086 = vmatpush1.bf16.msra.mxu0 %v896
  %1087 = vmatprep.subr.bf16.mxu0 0
  %1088 = vmatpush1.bf16.msra.mxu0 %v897
  %1089 = vmatprep.subr.bf16.mxu0 0
  %1090 = vmatpush1.bf16.msra.mxu0 %v898
  %1091 = vmatprep.subr.bf16.mxu0 0
  %1092 = vmatpush1.bf16.msra.mxu0 %v899
  %1093 = vmatprep.subr.bf16.mxu0 0
  %1094 = vmatpush1.bf16.msra.mxu0 %v900
  %1095 = vmatprep.mubr.bf16.mxu0 %v459
  %1096 = vmatmul.mubr.bf16.gmra.mrb[0].mxu0 %v458
  %v1097 = vpop.f32.mrb[0].mxu0
  %v1098 = vadd.f32 %v1057, %v1097
  %v1099 = vpop.f32.mrb[0].mxu0
  %v1100 = vpop.f32.mrb[0].mxu0
  %v1101 = vadd.f32 %v1060, %v1100
  %v1102 = vpop.f32.mrb[0].mxu0
  %1103 = vdwg.mxu0
  %1104 = vmatprep.subr.bf16.mxu0 0
  %1105 = vmatpush1.bf16.msra.mxu0 %v901
  %1106 = vmatprep.subr.bf16.mxu0 0
  %1107 = vmatpush1.bf16.msra.mxu0 %v902
  %1108 = vmatprep.subr.bf16.mxu0 0
  %1109 = vmatpush1.bf16.msra.mxu0 %v903
  %1110 = vmatprep.subr.bf16.mxu0 0
  %1111 = vmatpush1.bf16.msra.mxu0 %v904
  %1112 = vmatprep.subr.bf16.mxu0 0
  %1113 = vmatpush1.bf16.msra.mxu0 %v905
  %1114 = vmatprep.subr.bf16.mxu0 0
  %1115 = vmatpush1.bf16.msra.mxu0 %v906
  %1116 = vmatprep.subr.bf16.mxu0 0
  %1117 = vmatpush1.bf16.msra.mxu0 %v907
  %1118 = vmatprep.subr.bf16.mxu0 0
  %1119 = vmatpush1.bf16.msra.mxu0 %v908
  %1120 = vmatprep.subr.bf16.mxu0 0
  %1121 = vmatpush1.bf16.msra.mxu0 %v909
  %1122 = vmatprep.subr.bf16.mxu0 0
  %1123 = vmatpush1.bf16.msra.mxu0 %v910
  %1124 = vmatprep.subr.bf16.mxu0 0
  %1125 = vmatpush1.bf16.msra.mxu0 %v911
  %1126 = vmatprep.subr.bf16.mxu0 0
  %1127 = vmatpush1.bf16.msra.mxu0 %v912
  %1128 = vmatprep.subr.bf16.mxu0 0
  %1129 = vmatpush1.bf16.msra.mxu0 %v913
  %1130 = vmatprep.subr.bf16.mxu0 0
  %1131 = vmatpush1.bf16.msra.mxu0 %v914
  %1132 = vmatprep.subr.bf16.mxu0 0
  %1133 = vmatpush1.bf16.msra.mxu0 %v915
  %1134 = vmatprep.subr.bf16.mxu0 0
  %1135 = vmatpush1.bf16.msra.mxu0 %v916
  %1136 = vmatprep.mubr.bf16.mxu0 %v461
  %1137 = vmatmul.mubr.bf16.gmra.mrb[0].mxu0 %v460
  %v1138 = vpop.f32.mrb[0].mxu0
  %v1139 = vadd.f32 %v1098, %v1138
  %v1140 = vpop.f32.mrb[0].mxu0
  %v1141 = vpop.f32.mrb[0].mxu0
  %v1142 = vadd.f32 %v1101, %v1141
  %v1143 = vpop.f32.mrb[0].mxu0
  %1144 = vdwg.mxu0
  %v1145 = vlaneseq
  %v1146 = vand.u32 %v1145, 127
  %vm1147 = vcmp.lt.s32.totalorder %v1146, 6
  %v1148 = vsel %vm1147, 1, 0
  %v1149 = vcvt.s32.f32 %v1148
  %vm1150 = vcmp.eq.s32.totalorder %v1146, 6
  %v1151 = vsel %vm1150, 1, 0
  %v1152 = vcvt.s32.f32 %v1151
  %v1153 = vmul.f32 %v1139, %v1149
  %v1154 = vmul.f32 %v1142, %v1149
  %1155 = vadd.xlane.f32.xlu0 %v1153
  %v1156 = vpop.xlane.xlu0 %1155
  %1157 = vadd.xlane.f32.xlu0 %v1154
  %v1158 = vpop.xlane.xlu0 %1157
  %v1159 = vmul.f32 %v1156, 0.16666667
  %v1160 = vmul.f32 %v1158, 0.16666667
  %v1161 = vmul.f32 %v1139, %v1152
  %v1162 = vmul.f32 %v1142, %v1152
  %1163 = vadd.xlane.f32.xlu0 %v1161
  %v1164 = vpop.xlane.xlu0 %1163
  %1165 = vadd.xlane.f32.xlu0 %v1162
  %v1166 = vpop.xlane.xlu0 %1165
  %v1167 = vadd.f32 %v1139, %v1164
  %v1168 = vadd.f32 %v1142, %v1166
  %v1169 = vsub.f32 %v1167, %v1159
  %v1170 = vsub.f32 %v1168, %v1160
  %1171 = vst [vmem:[%s5] sm:$0xff] %v1169
  %1172 = vst [vmem:[%s5 + $0x8] sm:$0xff] %v1170
  // Predicated region
  $region22: #{dueling_dqn_forward.7} parent=0 // pred_check
    _
  $region23: #{dueling_dqn_forward.7} parent=0 // pred_check_branch
    %1174 = sbr.rel (0) target = $region25
  $region24: #{dueling_dqn_forward.7} parent=0 // pred_region
    _
  $region25: #{dueling_dqn_forward.7} parent=0 // pred_fallthru
    _
  // Predicated region
  $region26: #{dueling_dqn_forward.7} parent=0 // pred_check
    _
  $region27: #{dueling_dqn_forward.7} parent=0 // pred_check_branch
    %1176 = sbr.rel (0) target = $region29
  $region28: #{dueling_dqn_forward.7} parent=0 // pred_region
    _
  $region29: #{dueling_dqn_forward.7} parent=0 // pred_fallthru
    _

</llo_original>
